<compile_context>
chip_gen: v5e
topology: v5e:2x2
jax: 0.10.0
libtpu: 0.0.40
codegen_flags: <defaults>
</compile_context>

<pallas_src>
import functools
import math

import jax
import jax.numpy as jnp
import numpy as np
from jax.experimental import pallas as pl
from jax.experimental.pallas import tpu as pltpu


LANE = 128      # TPU lane width
CIN_PAD = 16    # per-tap input-channel slab (multiple of 8, >= max(c_in, c_mid))


# ----------------------------- Fused Pallas kernel ----------------------------

def _feature_cnn_kernel(x_ref, mask_l_ref, mask_r_ref,
                        w1_ref, b1_ref, w2_ref, b2_ref, w3_ref, b3_ref,
                        out_ref, act_ref, patch_ref, *,
                        H, W, c_in, c_mid, c_out, pad):
    """Fused conv1(+ReLU) -> conv2(+ReLU) -> conv3 for one batch element.

    Layout: channels on sublanes, flattened H*W spatial on lanes.

    x_ref      : (1, c_in, H*W)           input block (flat NCHW)
    mask_*_ref : (1, H*W)                 0/1 column-boundary masks (f32)
    w*_ref     : (cout, 9*CIN_PAD)        tap-packed weights (zero-padded channels)
    b*_ref     : (cout, 1)                biases
    out_ref    : (1, c_out, H*W)          output block (lane dense)
    act_ref    : (CIN_PAD, pad+H*W+pad)   flat, zero-padded activation scratch
    patch_ref  : (9*CIN_PAD, H*W)         im2col patch matrix scratch
    """
    HW = H * W
    CP = act_ref.shape[0]

    # Zero the whole activation scratch once per program (cheap: unmasked stores of a
    # (16, 512) f32 buffer).  Invariants this establishes and every layer preserves:
    #   * flat left/right padding columns stay zero  -> handles the dy = -1/+1 row shifts
    #   * sublane rows >= c_mid stay zero            -> K-padding rows contribute nothing
    act_ref[...] = jnp.zeros_like(act_ref)
    act_ref[0:c_in, pad:pad + HW] = x_ref[0]

    mask_l = mask_l_ref[...]   # 0.0 where w == 0    (taps with dx == 0 need w-1 >= 0)
    mask_r = mask_r_ref[...]   # 0.0 where w == W-1  (taps with dx == 2 need w+1 <= W-1)

    def conv3x3(w_ref, b_ref, relu):
        # Build the tap-packed im2col patch: rows [t*CP, (t+1)*CP) hold the activation
        # shifted by tap t = 3*dy + dx (dy, dx in {0,1,2} <-> spatial offsets -1,0,+1).
        # Row (dy) out-of-range pixels land in the zero flat padding of act_ref; column
        # (dx) wrap-around pixels are killed by the 0/1 lane masks.
        for t in range(9):
            dy, dx = t // 3, t % 3
            s = (dy - 1) * W + (dx - 1)
            slab = act_ref[:, pad + s:pad + s + HW]          # (CP, HW)
            if dx == 0:
                slab = slab * mask_l
            elif dx == 2:
                slab = slab * mask_r
            patch_ref[t * CP:(t + 1) * CP, :] = slab
        # One MXU matmul per layer: (cout, 9*CP) @ (9*CP, HW) -> (cout, HW), f32.
        y = jnp.dot(w_ref[...], patch_ref[...],
                    preferred_element_type=jnp.float32) + b_ref[...]
        if relu:
            y = jnp.maximum(y, 0.0)
        return y                                             # (cout, HW)

    # conv1 + ReLU
    y1 = conv3x3(w1_ref, b1_ref, relu=True)
    act_ref[0:c_mid, pad:pad + HW] = y1
    # conv2 + ReLU
    y2 = conv3x3(w2_ref, b2_ref, relu=True)
    act_ref[0:c_mid, pad:pad + HW] = y2
    # conv3 (no activation); lane-dense 256-wide store.
    y3 = conv3x3(w3_ref, b3_ref, relu=False)                 # (c_out, HW)
    out_ref[0] = y3.astype(out_ref.dtype)


def feature_cnn_forward(x_nchw, packed_params):
    """Fused Pallas implementation of FeatureCNN.forward.

    x_nchw        : (N, C, H, W) float32 (PyTorch layout)
    packed_params : list of (w (cout, 9*CIN_PAD), b (cout, 1)) for conv1..conv3
    returns       : (N, 1, H, W) float32
    """
    (w1, b1), (w2, b2), (w3, b3) = packed_params
    N, c_in, H, W = x_nchw.shape
    HW = H * W
    c_mid = w1.shape[0]
    c_out = w3.shape[0]
    assert max(c_in, c_mid, c_out) <= CIN_PAD

    # Free reshape (no transpose): NCHW -> (N, C, H*W).  Channels land on sublanes,
    # flattened spatial on lanes; each program's input DMA is contiguous.
    x = x_nchw.reshape(N, c_in, HW)

    # Flat zero padding (in flattened-pixel units) for the dy = -1/+1 row shifts,
    # rounded to a lane tile so the centre slice and all write-backs are 128-aligned.
    pad = pl.cdiv(W + 1, LANE) * LANE

    # Column-boundary masks: the only part of the 3x3 footprint that flat padding
    # cannot express (w wrap-around).  Computed outside the kernel, VMEM resident.
    col = jnp.arange(HW, dtype=jnp.int32) % W
    mask_l = (col >= 1).astype(jnp.float32).reshape(1, HW)
    mask_r = (col <= W - 2).astype(jnp.float32).reshape(1, HW)

    kernel = functools.partial(_feature_cnn_kernel, H=H, W=W, c_in=c_in,
                               c_mid=c_mid, c_out=c_out, pad=pad)

    const2d = lambda n: (0, 0)   # weights / biases / masks: fetched once, VMEM resident

    out = pl.pallas_call(
        kernel,
        out_shape=jax.ShapeDtypeStruct((N, c_out, HW), jnp.float32),
        grid_spec=pltpu.PrefetchScalarGridSpec(
            num_scalar_prefetch=0,
            grid=(N,),  # one image per program; "parallel" -> both v7x TensorCores
            in_specs=[
                pl.BlockSpec((1, c_in, HW), lambda n: (n, 0, 0)),
                pl.BlockSpec((1, HW), const2d),
                pl.BlockSpec((1, HW), const2d),
                pl.BlockSpec((c_mid, 9 * CIN_PAD), const2d),
                pl.BlockSpec((c_mid, 1), const2d),
                pl.BlockSpec((c_mid, 9 * CIN_PAD), const2d),
                pl.BlockSpec((c_mid, 1), const2d),
                pl.BlockSpec((c_out, 9 * CIN_PAD), const2d),
                pl.BlockSpec((c_out, 1), const2d),
            ],
            out_specs=pl.BlockSpec((1, c_out, HW), lambda n: (n, 0, 0)),
            scratch_shapes=[
                pltpu.VMEM((CIN_PAD, pad + HW + pad), jnp.float32),   # flat activation
                pltpu.VMEM((9 * CIN_PAD, HW), jnp.float32),           # im2col patch
            ],
        ),
        compiler_params=pltpu.CompilerParams(
            dimension_semantics=("parallel",),
        ),
    )(x, mask_l, mask_r, w1, b1, w2, b2, w3, b3)

    return out.reshape(N, c_out, H, W)   # free reshape back to NCHW


# ----------------------------- Param packing (hoisted) ------------------------

def pack_params(params):
    """Convert PyTorch-layout params once into the kernel's tap-packed layout.

    (cout, cin, 3, 3) -> (cout, 9*CIN_PAD) with element [co, t*CIN_PAD + ci] =
    w[co, ci, t//3, t%3] (zeros for ci >= cin); bias -> (cout, 1).
    """
    packed = []
    for w, b in params:
        cout, cin, kh, kw = w.shape
        wt = jnp.transpose(w, (0, 2, 3, 1)).reshape(cout, kh * kw, cin)  # [co,t,ci]
        wk = jnp.zeros((cout, kh * kw, CIN_PAD), w.dtype).at[:, :, :cin].set(wt)
        packed.append((wk.reshape(cout, kh * kw * CIN_PAD), b.reshape(cout, 1)))
    return packed


# ----------------------------- Pure-JAX reference -----------------------------

def reference_forward(x_nchw, params):
    """Pure-JAX reference (lax conv) for correctness checking."""
    x = x_nchw
    num_layers = len(params)
    for i, (w, b) in enumerate(params):
        x = jax.lax.conv_general_dilated(
            x, w, window_strides=(1, 1), padding="SAME",
            dimension_numbers=("NCHW", "OIHW", "NCHW"))
        x = x + b.reshape(1, -1, 1, 1)
        if i < num_layers - 1:
            x = jnp.maximum(x, 0.0)
    return x


# ----------------------------- Param init -------------------------------------

def init_feature_cnn_params(key, n_features):
    """Deterministic synthetic init matching FeatureCNN layer shapes."""
    layer_io = [(n_features, 12), (12, 12), (12, 1)]
    params = []
    for cin, cout in layer_io:
        key, kw, kb = jax.random.split(key, 3)
        fan_in = cin * 3 * 3
        bound = 1.0 / math.sqrt(fan_in)
        w = jax.random.uniform(kw, (cout, cin, 3, 3), jnp.float32, -bound, bound)
        b = jax.random.uniform(kb, (cout,), jnp.float32, -bound, bound)
        params.append((w, b))
    return params


# ----------------------------- Main --------------------------------------------

if __name__ == "__main__":
    n_features = 4
    N, H, W = 2, 16, 16

    key = jax.random.PRNGKey(0)
    key, kx = jax.random.split(key)
    x = jax.random.normal(kx, (N, n_features, H, W), dtype=jnp.float32)
    params = init_feature_cnn_params(key, n_features)
    packed = pack_params(params)  # hoisted: done once, not per forward call

    forward = jax.jit(feature_cnn_forward)
    out = jax.block_until_ready(forward(x, packed))

    ref = jax.block_until_ready(reference_forward(x, params))

    assert out.shape == (N, 1, H, W), out.shape
    np.testing.assert_allclose(np.asarray(out), np.asarray(ref), rtol=1e-4, atol=1e-4)

    print("KERNEL_OK")
</pallas_src>

<mosaic_0001>
module attributes {stable_mosaic.version = 11 : i64} {
  func.func @_feature_cnn_kernel(%arg0: i32, %arg1: memref<1x4x256xf32, #tpu.memory_space<vmem>>, %arg2: memref<1x256xf32, #tpu.memory_space<vmem>>, %arg3: memref<1x256xf32, #tpu.memory_space<vmem>>, %arg4: memref<12x144xf32, #tpu.memory_space<vmem>>, %arg5: memref<12x1xf32, #tpu.memory_space<vmem>>, %arg6: memref<12x144xf32, #tpu.memory_space<vmem>>, %arg7: memref<12x1xf32, #tpu.memory_space<vmem>>, %arg8: memref<1x144xf32, #tpu.memory_space<vmem>>, %arg9: memref<1x1xf32, #tpu.memory_space<vmem>>, %arg10: memref<1x1x256xf32, #tpu.memory_space<vmem>>, %arg11: memref<16x512xf32, #tpu.memory_space<vmem>>, %arg12: memref<144x256xf32, #tpu.memory_space<vmem>>) attributes {dimension_semantics = [#tpu.dimension_semantics<parallel>], iteration_bounds = array<i64: 2>, scalar_prefetch = 0 : i64, scratch_operands = 2 : i64, tpu.core_type = #tpu.core_type<tc>, window_params = [{transform_indices = @transform_0, window_bounds = array<i64: 1, 4, 256>}, {pipeline_mode = #tpu.pipeline_mode<synchronous>, transform_indices = @transform_1, window_bounds = array<i64: 1, 256>}, {pipeline_mode = #tpu.pipeline_mode<synchronous>, transform_indices = @transform_2, window_bounds = array<i64: 1, 256>}, {pipeline_mode = #tpu.pipeline_mode<synchronous>, transform_indices = @transform_3, window_bounds = array<i64: 12, 144>}, {pipeline_mode = #tpu.pipeline_mode<synchronous>, transform_indices = @transform_4, window_bounds = array<i64: 12, 1>}, {pipeline_mode = #tpu.pipeline_mode<synchronous>, transform_indices = @transform_5, window_bounds = array<i64: 12, 144>}, {pipeline_mode = #tpu.pipeline_mode<synchronous>, transform_indices = @transform_6, window_bounds = array<i64: 12, 1>}, {pipeline_mode = #tpu.pipeline_mode<synchronous>, transform_indices = @transform_7, window_bounds = array<i64: 1, 144>}, {pipeline_mode = #tpu.pipeline_mode<synchronous>, transform_indices = @transform_8, window_bounds = array<i64: 1, 1>}, {transform_indices = @transform_9, window_bounds = array<i64: 1, 1, 256>}]} {
    %cst = arith.constant 0.000000e+00 : f32
    %0 = vector.broadcast %cst : f32 to vector<16x512xf32>
    %c0 = arith.constant 0 : index
    %c0_0 = arith.constant 0 : index
    %1 = vector.load %arg11[%c0, %c0_0] : memref<16x512xf32, #tpu.memory_space<vmem>>, vector<16x512xf32>
    tpu.vector_store %arg11[%c0, %c0_0], %0 {strides = array<i32>} : memref<16x512xf32, #tpu.memory_space<vmem>>, vector<16x512xf32>,
    %c0_1 = arith.constant 0 : index
    %c0_2 = arith.constant 0 : index
    %c0_3 = arith.constant 0 : index
    %2 = vector.load %arg1[%c0_1, %c0_2, %c0_3] : memref<1x4x256xf32, #tpu.memory_space<vmem>>, vector<1x4x256xf32>
    %3 = vector.shape_cast %2 : vector<1x4x256xf32> to vector<4x256xf32>
    %c0_4 = arith.constant 0 : index
    %c128 = arith.constant 128 : index
    %4 = vector.load %arg11[%c0_4, %c128] : memref<16x512xf32, #tpu.memory_space<vmem>>, vector<4x256xf32>
    tpu.vector_store %arg11[%c0_4, %c128], %3 {strides = array<i32>} : memref<16x512xf32, #tpu.memory_space<vmem>>, vector<4x256xf32>,
    %c0_5 = arith.constant 0 : index
    %c0_6 = arith.constant 0 : index
    %5 = vector.load %arg2[%c0_5, %c0_6] : memref<1x256xf32, #tpu.memory_space<vmem>>, vector<1x256xf32>
    %c0_7 = arith.constant 0 : index
    %c0_8 = arith.constant 0 : index
    %6 = vector.load %arg3[%c0_7, %c0_8] : memref<1x256xf32, #tpu.memory_space<vmem>>, vector<1x256xf32>
    %c0_9 = arith.constant 0 : index
    %c111 = arith.constant 111 : index
    %7 = vector.load %arg11[%c0_9, %c111] : memref<16x512xf32, #tpu.memory_space<vmem>>, vector<16x256xf32>
    %8 = vector.broadcast %5 : vector<1x256xf32> to vector<16x256xf32>
    %9 = arith.mulf %7, %8 : vector<16x256xf32>
    %c0_10 = arith.constant 0 : index
    %c0_11 = arith.constant 0 : index
    %10 = vector.load %arg12[%c0_10, %c0_11] : memref<144x256xf32, #tpu.memory_space<vmem>>, vector<16x256xf32>
    tpu.vector_store %arg12[%c0_10, %c0_11], %9 {strides = array<i32>} : memref<144x256xf32, #tpu.memory_space<vmem>>, vector<16x256xf32>,
    %c0_12 = arith.constant 0 : index
    %c112 = arith.constant 112 : index
    %11 = vector.load %arg11[%c0_12, %c112] : memref<16x512xf32, #tpu.memory_space<vmem>>, vector<16x256xf32>
    %c16 = arith.constant 16 : index
    %c0_13 = arith.constant 0 : index
    %12 = vector.load %arg12[%c16, %c0_13] : memref<144x256xf32, #tpu.memory_space<vmem>>, vector<16x256xf32>
    tpu.vector_store %arg12[%c16, %c0_13], %11 {strides = array<i32>} : memref<144x256xf32, #tpu.memory_space<vmem>>, vector<16x256xf32>,
    %c0_14 = arith.constant 0 : index
    %c113 = arith.constant 113 : index
    %13 = vector.load %arg11[%c0_14, %c113] : memref<16x512xf32, #tpu.memory_space<vmem>>, vector<16x256xf32>
    %14 = vector.broadcast %6 : vector<1x256xf32> to vector<16x256xf32>
    %15 = arith.mulf %13, %14 : vector<16x256xf32>
    %c32 = arith.constant 32 : index
    %c0_15 = arith.constant 0 : index
    %16 = vector.load %arg12[%c32, %c0_15] : memref<144x256xf32, #tpu.memory_space<vmem>>, vector<16x256xf32>
    tpu.vector_store %arg12[%c32, %c0_15], %15 {strides = array<i32>} : memref<144x256xf32, #tpu.memory_space<vmem>>, vector<16x256xf32>,
    %c0_16 = arith.constant 0 : index
    %c127 = arith.constant 127 : index
    %17 = vector.load %arg11[%c0_16, %c127] : memref<16x512xf32, #tpu.memory_space<vmem>>, vector<16x256xf32>
    %18 = vector.broadcast %5 : vector<1x256xf32> to vector<16x256xf32>
    %19 = arith.mulf %17, %18 : vector<16x256xf32>
    %c48 = arith.constant 48 : index
    %c0_17 = arith.constant 0 : index
    %20 = vector.load %arg12[%c48, %c0_17] : memref<144x256xf32, #tpu.memory_space<vmem>>, vector<16x256xf32>
    tpu.vector_store %arg12[%c48, %c0_17], %19 {strides = array<i32>} : memref<144x256xf32, #tpu.memory_space<vmem>>, vector<16x256xf32>,
    %c0_18 = arith.constant 0 : index
    %c128_19 = arith.constant 128 : index
    %21 = vector.load %arg11[%c0_18, %c128_19] : memref<16x512xf32, #tpu.memory_space<vmem>>, vector<16x256xf32>
    %c64 = arith.constant 64 : index
    %c0_20 = arith.constant 0 : index
    %22 = vector.load %arg12[%c64, %c0_20] : memref<144x256xf32, #tpu.memory_space<vmem>>, vector<16x256xf32>
    tpu.vector_store %arg12[%c64, %c0_20], %21 {strides = array<i32>} : memref<144x256xf32, #tpu.memory_space<vmem>>, vector<16x256xf32>,
    %c0_21 = arith.constant 0 : index
    %c129 = arith.constant 129 : index
    %23 = vector.load %arg11[%c0_21, %c129] : memref<16x512xf32, #tpu.memory_space<vmem>>, vector<16x256xf32>
    %24 = vector.broadcast %6 : vector<1x256xf32> to vector<16x256xf32>
    %25 = arith.mulf %23, %24 : vector<16x256xf32>
    %c80 = arith.constant 80 : index
    %c0_22 = arith.constant 0 : index
    %26 = vector.load %arg12[%c80, %c0_22] : memref<144x256xf32, #tpu.memory_space<vmem>>, vector<16x256xf32>
    tpu.vector_store %arg12[%c80, %c0_22], %25 {strides = array<i32>} : memref<144x256xf32, #tpu.memory_space<vmem>>, vector<16x256xf32>,
    %c0_23 = arith.constant 0 : index
    %c143 = arith.constant 143 : index
    %27 = vector.load %arg11[%c0_23, %c143] : memref<16x512xf32, #tpu.memory_space<vmem>>, vector<16x256xf32>
    %28 = vector.broadcast %5 : vector<1x256xf32> to vector<16x256xf32>
    %29 = arith.mulf %27, %28 : vector<16x256xf32>
    %c96 = arith.constant 96 : index
    %c0_24 = arith.constant 0 : index
    %30 = vector.load %arg12[%c96, %c0_24] : memref<144x256xf32, #tpu.memory_space<vmem>>, vector<16x256xf32>
    tpu.vector_store %arg12[%c96, %c0_24], %29 {strides = array<i32>} : memref<144x256xf32, #tpu.memory_space<vmem>>, vector<16x256xf32>,
    %c0_25 = arith.constant 0 : index
    %c144 = arith.constant 144 : index
    %31 = vector.load %arg11[%c0_25, %c144] : memref<16x512xf32, #tpu.memory_space<vmem>>, vector<16x256xf32>
    %c112_26 = arith.constant 112 : index
    %c0_27 = arith.constant 0 : index
    %32 = vector.load %arg12[%c112_26, %c0_27] : memref<144x256xf32, #tpu.memory_space<vmem>>, vector<16x256xf32>
    tpu.vector_store %arg12[%c112_26, %c0_27], %31 {strides = array<i32>} : memref<144x256xf32, #tpu.memory_space<vmem>>, vector<16x256xf32>,
    %c0_28 = arith.constant 0 : index
    %c145 = arith.constant 145 : index
    %33 = vector.load %arg11[%c0_28, %c145] : memref<16x512xf32, #tpu.memory_space<vmem>>, vector<16x256xf32>
    %34 = vector.broadcast %6 : vector<1x256xf32> to vector<16x256xf32>
    %35 = arith.mulf %33, %34 : vector<16x256xf32>
    %c128_29 = arith.constant 128 : index
    %c0_30 = arith.constant 0 : index
    %36 = vector.load %arg12[%c128_29, %c0_30] : memref<144x256xf32, #tpu.memory_space<vmem>>, vector<16x256xf32>
    tpu.vector_store %arg12[%c128_29, %c0_30], %35 {strides = array<i32>} : memref<144x256xf32, #tpu.memory_space<vmem>>, vector<16x256xf32>,
    %c0_31 = arith.constant 0 : index
    %c0_32 = arith.constant 0 : index
    %37 = vector.load %arg4[%c0_31, %c0_32] : memref<12x144xf32, #tpu.memory_space<vmem>>, vector<12x144xf32>
    %c0_33 = arith.constant 0 : index
    %c0_34 = arith.constant 0 : index
    %38 = vector.load %arg12[%c0_33, %c0_34] : memref<144x256xf32, #tpu.memory_space<vmem>>, vector<144x256xf32>
    %cst_35 = arith.constant dense<0.000000e+00> : vector<12x256xf32>
    %39 = tpu.matmul %37, %38, %cst_35 {dimension_numbers = #tpu.dot_dimension_numbers<[1], [0], [0], [1], [0, 0, 1, 1], [], []>} : vector<12x144xf32>, vector<144x256xf32>, vector<12x256xf32> -> vector<12x256xf32>
    %c0_36 = arith.constant 0 : index
    %c0_37 = arith.constant 0 : index
    %40 = vector.load %arg5[%c0_36, %c0_37] : memref<12x1xf32, #tpu.memory_space<vmem>>, vector<12x1xf32>
    %41 = vector.broadcast %40 : vector<12x1xf32> to vector<12x256xf32>
    %42 = arith.addf %39, %41 : vector<12x256xf32>
    %cst_38 = arith.constant 0.000000e+00 : f32
    %43 = vector.broadcast %cst_38 : f32 to vector<12x256xf32>
    %44 = arith.maximumf %42, %43 : vector<12x256xf32>
    %c0_39 = arith.constant 0 : index
    %c128_40 = arith.constant 128 : index
    %45 = vector.load %arg11[%c0_39, %c128_40] : memref<16x512xf32, #tpu.memory_space<vmem>>, vector<12x256xf32>
    tpu.vector_store %arg11[%c0_39, %c128_40], %44 {strides = array<i32>} : memref<16x512xf32, #tpu.memory_space<vmem>>, vector<12x256xf32>,
    %c0_41 = arith.constant 0 : index
    %c111_42 = arith.constant 111 : index
    %46 = vector.load %arg11[%c0_41, %c111_42] : memref<16x512xf32, #tpu.memory_space<vmem>>, vector<16x256xf32>
    %47 = vector.broadcast %5 : vector<1x256xf32> to vector<16x256xf32>
    %48 = arith.mulf %46, %47 : vector<16x256xf32>
    %c0_43 = arith.constant 0 : index
    %c0_44 = arith.constant 0 : index
    %49 = vector.load %arg12[%c0_43, %c0_44] : memref<144x256xf32, #tpu.memory_space<vmem>>, vector<16x256xf32>
    tpu.vector_store %arg12[%c0_43, %c0_44], %48 {strides = array<i32>} : memref<144x256xf32, #tpu.memory_space<vmem>>, vector<16x256xf32>,
    %c0_45 = arith.constant 0 : index
    %c112_46 = arith.constant 112 : index
    %50 = vector.load %arg11[%c0_45, %c112_46] : memref<16x512xf32, #tpu.memory_space<vmem>>, vector<16x256xf32>
    %c16_47 = arith.constant 16 : index
    %c0_48 = arith.constant 0 : index
    %51 = vector.load %arg12[%c16_47, %c0_48] : memref<144x256xf32, #tpu.memory_space<vmem>>, vector<16x256xf32>
    tpu.vector_store %arg12[%c16_47, %c0_48], %50 {strides = array<i32>} : memref<144x256xf32, #tpu.memory_space<vmem>>, vector<16x256xf32>,
    %c0_49 = arith.constant 0 : index
    %c113_50 = arith.constant 113 : index
    %52 = vector.load %arg11[%c0_49, %c113_50] : memref<16x512xf32, #tpu.memory_space<vmem>>, vector<16x256xf32>
    %53 = vector.broadcast %6 : vector<1x256xf32> to vector<16x256xf32>
    %54 = arith.mulf %52, %53 : vector<16x256xf32>
    %c32_51 = arith.constant 32 : index
    %c0_52 = arith.constant 0 : index
    %55 = vector.load %arg12[%c32_51, %c0_52] : memref<144x256xf32, #tpu.memory_space<vmem>>, vector<16x256xf32>
    tpu.vector_store %arg12[%c32_51, %c0_52], %54 {strides = array<i32>} : memref<144x256xf32, #tpu.memory_space<vmem>>, vector<16x256xf32>,
    %c0_53 = arith.constant 0 : index
    %c127_54 = arith.constant 127 : index
    %56 = vector.load %arg11[%c0_53, %c127_54] : memref<16x512xf32, #tpu.memory_space<vmem>>, vector<16x256xf32>
    %57 = vector.broadcast %5 : vector<1x256xf32> to vector<16x256xf32>
    %58 = arith.mulf %56, %57 : vector<16x256xf32>
    %c48_55 = arith.constant 48 : index
    %c0_56 = arith.constant 0 : index
    %59 = vector.load %arg12[%c48_55, %c0_56] : memref<144x256xf32, #tpu.memory_space<vmem>>, vector<16x256xf32>
    tpu.vector_store %arg12[%c48_55, %c0_56], %58 {strides = array<i32>} : memref<144x256xf32, #tpu.memory_space<vmem>>, vector<16x256xf32>,
    %c0_57 = arith.constant 0 : index
    %c128_58 = arith.constant 128 : index
    %60 = vector.load %arg11[%c0_57, %c128_58] : memref<16x512xf32, #tpu.memory_space<vmem>>, vector<16x256xf32>
    %c64_59 = arith.constant 64 : index
    %c0_60 = arith.constant 0 : index
    %61 = vector.load %arg12[%c64_59, %c0_60] : memref<144x256xf32, #tpu.memory_space<vmem>>, vector<16x256xf32>
    tpu.vector_store %arg12[%c64_59, %c0_60], %60 {strides = array<i32>} : memref<144x256xf32, #tpu.memory_space<vmem>>, vector<16x256xf32>,
    %c0_61 = arith.constant 0 : index
    %c129_62 = arith.constant 129 : index
    %62 = vector.load %arg11[%c0_61, %c129_62] : memref<16x512xf32, #tpu.memory_space<vmem>>, vector<16x256xf32>
    %63 = vector.broadcast %6 : vector<1x256xf32> to vector<16x256xf32>
    %64 = arith.mulf %62, %63 : vector<16x256xf32>
    %c80_63 = arith.constant 80 : index
    %c0_64 = arith.constant 0 : index
    %65 = vector.load %arg12[%c80_63, %c0_64] : memref<144x256xf32, #tpu.memory_space<vmem>>, vector<16x256xf32>
    tpu.vector_store %arg12[%c80_63, %c0_64], %64 {strides = array<i32>} : memref<144x256xf32, #tpu.memory_space<vmem>>, vector<16x256xf32>,
    %c0_65 = arith.constant 0 : index
    %c143_66 = arith.constant 143 : index
    %66 = vector.load %arg11[%c0_65, %c143_66] : memref<16x512xf32, #tpu.memory_space<vmem>>, vector<16x256xf32>
    %67 = vector.broadcast %5 : vector<1x256xf32> to vector<16x256xf32>
    %68 = arith.mulf %66, %67 : vector<16x256xf32>
    %c96_67 = arith.constant 96 : index
    %c0_68 = arith.constant 0 : index
    %69 = vector.load %arg12[%c96_67, %c0_68] : memref<144x256xf32, #tpu.memory_space<vmem>>, vector<16x256xf32>
    tpu.vector_store %arg12[%c96_67, %c0_68], %68 {strides = array<i32>} : memref<144x256xf32, #tpu.memory_space<vmem>>, vector<16x256xf32>,
    %c0_69 = arith.constant 0 : index
    %c144_70 = arith.constant 144 : index
    %70 = vector.load %arg11[%c0_69, %c144_70] : memref<16x512xf32, #tpu.memory_space<vmem>>, vector<16x256xf32>
    %c112_71 = arith.constant 112 : index
    %c0_72 = arith.constant 0 : index
    %71 = vector.load %arg12[%c112_71, %c0_72] : memref<144x256xf32, #tpu.memory_space<vmem>>, vector<16x256xf32>
    tpu.vector_store %arg12[%c112_71, %c0_72], %70 {strides = array<i32>} : memref<144x256xf32, #tpu.memory_space<vmem>>, vector<16x256xf32>,
    %c0_73 = arith.constant 0 : index
    %c145_74 = arith.constant 145 : index
    %72 = vector.load %arg11[%c0_73, %c145_74] : memref<16x512xf32, #tpu.memory_space<vmem>>, vector<16x256xf32>
    %73 = vector.broadcast %6 : vector<1x256xf32> to vector<16x256xf32>
    %74 = arith.mulf %72, %73 : vector<16x256xf32>
    %c128_75 = arith.constant 128 : index
    %c0_76 = arith.constant 0 : index
    %75 = vector.load %arg12[%c128_75, %c0_76] : memref<144x256xf32, #tpu.memory_space<vmem>>, vector<16x256xf32>
    tpu.vector_store %arg12[%c128_75, %c0_76], %74 {strides = array<i32>} : memref<144x256xf32, #tpu.memory_space<vmem>>, vector<16x256xf32>,
    %c0_77 = arith.constant 0 : index
    %c0_78 = arith.constant 0 : index
    %76 = vector.load %arg6[%c0_77, %c0_78] : memref<12x144xf32, #tpu.memory_space<vmem>>, vector<12x144xf32>
    %c0_79 = arith.constant 0 : index
    %c0_80 = arith.constant 0 : index
    %77 = vector.load %arg12[%c0_79, %c0_80] : memref<144x256xf32, #tpu.memory_space<vmem>>, vector<144x256xf32>
    %cst_81 = arith.constant dense<0.000000e+00> : vector<12x256xf32>
    %78 = tpu.matmul %76, %77, %cst_81 {dimension_numbers = #tpu.dot_dimension_numbers<[1], [0], [0], [1], [0, 0, 1, 1], [], []>} : vector<12x144xf32>, vector<144x256xf32>, vector<12x256xf32> -> vector<12x256xf32>
    %c0_82 = arith.constant 0 : index
    %c0_83 = arith.constant 0 : index
    %79 = vector.load %arg7[%c0_82, %c0_83] : memref<12x1xf32, #tpu.memory_space<vmem>>, vector<12x1xf32>
    %80 = vector.broadcast %79 : vector<12x1xf32> to vector<12x256xf32>
    %81 = arith.addf %78, %80 : vector<12x256xf32>
    %cst_84 = arith.constant 0.000000e+00 : f32
    %82 = vector.broadcast %cst_84 : f32 to vector<12x256xf32>
    %83 = arith.maximumf %81, %82 : vector<12x256xf32>
    %c0_85 = arith.constant 0 : index
    %c128_86 = arith.constant 128 : index
    %84 = vector.load %arg11[%c0_85, %c128_86] : memref<16x512xf32, #tpu.memory_space<vmem>>, vector<12x256xf32>
    tpu.vector_store %arg11[%c0_85, %c128_86], %83 {strides = array<i32>} : memref<16x512xf32, #tpu.memory_space<vmem>>, vector<12x256xf32>,
    %c0_87 = arith.constant 0 : index
    %c111_88 = arith.constant 111 : index
    %85 = vector.load %arg11[%c0_87, %c111_88] : memref<16x512xf32, #tpu.memory_space<vmem>>, vector<16x256xf32>
    %86 = vector.broadcast %5 : vector<1x256xf32> to vector<16x256xf32>
    %87 = arith.mulf %85, %86 : vector<16x256xf32>
    %c0_89 = arith.constant 0 : index
    %c0_90 = arith.constant 0 : index
    %88 = vector.load %arg12[%c0_89, %c0_90] : memref<144x256xf32, #tpu.memory_space<vmem>>, vector<16x256xf32>
    tpu.vector_store %arg12[%c0_89, %c0_90], %87 {strides = array<i32>} : memref<144x256xf32, #tpu.memory_space<vmem>>, vector<16x256xf32>,
    %c0_91 = arith.constant 0 : index
    %c112_92 = arith.constant 112 : index
    %89 = vector.load %arg11[%c0_91, %c112_92] : memref<16x512xf32, #tpu.memory_space<vmem>>, vector<16x256xf32>
    %c16_93 = arith.constant 16 : index
    %c0_94 = arith.constant 0 : index
    %90 = vector.load %arg12[%c16_93, %c0_94] : memref<144x256xf32, #tpu.memory_space<vmem>>, vector<16x256xf32>
    tpu.vector_store %arg12[%c16_93, %c0_94], %89 {strides = array<i32>} : memref<144x256xf32, #tpu.memory_space<vmem>>, vector<16x256xf32>,
    %c0_95 = arith.constant 0 : index
    %c113_96 = arith.constant 113 : index
    %91 = vector.load %arg11[%c0_95, %c113_96] : memref<16x512xf32, #tpu.memory_space<vmem>>, vector<16x256xf32>
    %92 = vector.broadcast %6 : vector<1x256xf32> to vector<16x256xf32>
    %93 = arith.mulf %91, %92 : vector<16x256xf32>
    %c32_97 = arith.constant 32 : index
    %c0_98 = arith.constant 0 : index
    %94 = vector.load %arg12[%c32_97, %c0_98] : memref<144x256xf32, #tpu.memory_space<vmem>>, vector<16x256xf32>
    tpu.vector_store %arg12[%c32_97, %c0_98], %93 {strides = array<i32>} : memref<144x256xf32, #tpu.memory_space<vmem>>, vector<16x256xf32>,
    %c0_99 = arith.constant 0 : index
    %c127_100 = arith.constant 127 : index
    %95 = vector.load %arg11[%c0_99, %c127_100] : memref<16x512xf32, #tpu.memory_space<vmem>>, vector<16x256xf32>
    %96 = vector.broadcast %5 : vector<1x256xf32> to vector<16x256xf32>
    %97 = arith.mulf %95, %96 : vector<16x256xf32>
    %c48_101 = arith.constant 48 : index
    %c0_102 = arith.constant 0 : index
    %98 = vector.load %arg12[%c48_101, %c0_102] : memref<144x256xf32, #tpu.memory_space<vmem>>, vector<16x256xf32>
    tpu.vector_store %arg12[%c48_101, %c0_102], %97 {strides = array<i32>} : memref<144x256xf32, #tpu.memory_space<vmem>>, vector<16x256xf32>,
    %c0_103 = arith.constant 0 : index
    %c128_104 = arith.constant 128 : index
    %99 = vector.load %arg11[%c0_103, %c128_104] : memref<16x512xf32, #tpu.memory_space<vmem>>, vector<16x256xf32>
    %c64_105 = arith.constant 64 : index
    %c0_106 = arith.constant 0 : index
    %100 = vector.load %arg12[%c64_105, %c0_106] : memref<144x256xf32, #tpu.memory_space<vmem>>, vector<16x256xf32>
    tpu.vector_store %arg12[%c64_105, %c0_106], %99 {strides = array<i32>} : memref<144x256xf32, #tpu.memory_space<vmem>>, vector<16x256xf32>,
    %c0_107 = arith.constant 0 : index
    %c129_108 = arith.constant 129 : index
    %101 = vector.load %arg11[%c0_107, %c129_108] : memref<16x512xf32, #tpu.memory_space<vmem>>, vector<16x256xf32>
    %102 = vector.broadcast %6 : vector<1x256xf32> to vector<16x256xf32>
    %103 = arith.mulf %101, %102 : vector<16x256xf32>
    %c80_109 = arith.constant 80 : index
    %c0_110 = arith.constant 0 : index
    %104 = vector.load %arg12[%c80_109, %c0_110] : memref<144x256xf32, #tpu.memory_space<vmem>>, vector<16x256xf32>
    tpu.vector_store %arg12[%c80_109, %c0_110], %103 {strides = array<i32>} : memref<144x256xf32, #tpu.memory_space<vmem>>, vector<16x256xf32>,
    %c0_111 = arith.constant 0 : index
    %c143_112 = arith.constant 143 : index
    %105 = vector.load %arg11[%c0_111, %c143_112] : memref<16x512xf32, #tpu.memory_space<vmem>>, vector<16x256xf32>
    %106 = vector.broadcast %5 : vector<1x256xf32> to vector<16x256xf32>
    %107 = arith.mulf %105, %106 : vector<16x256xf32>
    %c96_113 = arith.constant 96 : index
    %c0_114 = arith.constant 0 : index
    %108 = vector.load %arg12[%c96_113, %c0_114] : memref<144x256xf32, #tpu.memory_space<vmem>>, vector<16x256xf32>
    tpu.vector_store %arg12[%c96_113, %c0_114], %107 {strides = array<i32>} : memref<144x256xf32, #tpu.memory_space<vmem>>, vector<16x256xf32>,
    %c0_115 = arith.constant 0 : index
    %c144_116 = arith.constant 144 : index
    %109 = vector.load %arg11[%c0_115, %c144_116] : memref<16x512xf32, #tpu.memory_space<vmem>>, vector<16x256xf32>
    %c112_117 = arith.constant 112 : index
    %c0_118 = arith.constant 0 : index
    %110 = vector.load %arg12[%c112_117, %c0_118] : memref<144x256xf32, #tpu.memory_space<vmem>>, vector<16x256xf32>
    tpu.vector_store %arg12[%c112_117, %c0_118], %109 {strides = array<i32>} : memref<144x256xf32, #tpu.memory_space<vmem>>, vector<16x256xf32>,
    %c0_119 = arith.constant 0 : index
    %c145_120 = arith.constant 145 : index
    %111 = vector.load %arg11[%c0_119, %c145_120] : memref<16x512xf32, #tpu.memory_space<vmem>>, vector<16x256xf32>
    %112 = vector.broadcast %6 : vector<1x256xf32> to vector<16x256xf32>
    %113 = arith.mulf %111, %112 : vector<16x256xf32>
    %c128_121 = arith.constant 128 : index
    %c0_122 = arith.constant 0 : index
    %114 = vector.load %arg12[%c128_121, %c0_122] : memref<144x256xf32, #tpu.memory_space<vmem>>, vector<16x256xf32>
    tpu.vector_store %arg12[%c128_121, %c0_122], %113 {strides = array<i32>} : memref<144x256xf32, #tpu.memory_space<vmem>>, vector<16x256xf32>,
    %c0_123 = arith.constant 0 : index
    %c0_124 = arith.constant 0 : index
    %115 = vector.load %arg8[%c0_123, %c0_124] : memref<1x144xf32, #tpu.memory_space<vmem>>, vector<1x144xf32>
    %c0_125 = arith.constant 0 : index
    %c0_126 = arith.constant 0 : index
    %116 = vector.load %arg12[%c0_125, %c0_126] : memref<144x256xf32, #tpu.memory_space<vmem>>, vector<144x256xf32>
    %cst_127 = arith.constant dense<0.000000e+00> : vector<1x256xf32>
    %117 = tpu.matmul %115, %116, %cst_127 {dimension_numbers = #tpu.dot_dimension_numbers<[1], [0], [0], [1], [0, 0, 1, 1], [], []>} : vector<1x144xf32>, vector<144x256xf32>, vector<1x256xf32> -> vector<1x256xf32>
    %c0_128 = arith.constant 0 : index
    %c0_129 = arith.constant 0 : index
    %118 = vector.load %arg9[%c0_128, %c0_129] : memref<1x1xf32, #tpu.memory_space<vmem>>, vector<1x1xf32>
    %119 = vector.broadcast %118 : vector<1x1xf32> to vector<1x256xf32>
    %120 = arith.addf %117, %119 : vector<1x256xf32>
    %c0_130 = arith.constant 0 : index
    %c0_131 = arith.constant 0 : index
    %c0_132 = arith.constant 0 : index
    %121 = vector.load %arg10[%c0_130, %c0_131, %c0_132] : memref<1x1x256xf32, #tpu.memory_space<vmem>>, vector<1x1x256xf32>
    %122 = vector.shape_cast %121 : vector<1x1x256xf32> to vector<1x256xf32>
    %123 = vector.shape_cast %120 : vector<1x256xf32> to vector<1x1x256xf32>
    tpu.vector_store %arg10[%c0_130, %c0_131, %c0_132], %123 {strides = array<i32>} : memref<1x1x256xf32, #tpu.memory_space<vmem>>, vector<1x1x256xf32>,
    return
  }
  func.func @transform_0(%arg0: i32) -> (i32, i32, i32) {
    %c0_i32 = arith.constant 0 : i32
    %c0_i32_0 = arith.constant 0 : i32
    %c0_i32_1 = arith.constant 0 : i32
    return %arg0, %c0_i32, %c0_i32_0 : i32, i32, i32
  }
  func.func @transform_1(%arg0: i32) -> (i32, i32) {
    %c0_i32 = arith.constant 0 : i32
    %c0_i32_0 = arith.constant 0 : i32
    %c0_i32_1 = arith.constant 0 : i32
    return %c0_i32, %c0_i32_0 : i32, i32
  }
  func.func @transform_2(%arg0: i32) -> (i32, i32) {
    %c0_i32 = arith.constant 0 : i32
    %c0_i32_0 = arith.constant 0 : i32
    %c0_i32_1 = arith.constant 0 : i32
    return %c0_i32, %c0_i32_0 : i32, i32
  }
  func.func @transform_3(%arg0: i32) -> (i32, i32) {
    %c0_i32 = arith.constant 0 : i32
    %c0_i32_0 = arith.constant 0 : i32
    %c0_i32_1 = arith.constant 0 : i32
    return %c0_i32, %c0_i32_0 : i32, i32
  }
  func.func @transform_4(%arg0: i32) -> (i32, i32) {
    %c0_i32 = arith.constant 0 : i32
    %c0_i32_0 = arith.constant 0 : i32
    %c0_i32_1 = arith.constant 0 : i32
    return %c0_i32, %c0_i32_0 : i32, i32
  }
  func.func @transform_5(%arg0: i32) -> (i32, i32) {
    %c0_i32 = arith.constant 0 : i32
    %c0_i32_0 = arith.constant 0 : i32
    %c0_i32_1 = arith.constant 0 : i32
    return %c0_i32, %c0_i32_0 : i32, i32
  }
  func.func @transform_6(%arg0: i32) -> (i32, i32) {
    %c0_i32 = arith.constant 0 : i32
    %c0_i32_0 = arith.constant 0 : i32
    %c0_i32_1 = arith.constant 0 : i32
    return %c0_i32, %c0_i32_0 : i32, i32
  }
  func.func @transform_7(%arg0: i32) -> (i32, i32) {
    %c0_i32 = arith.constant 0 : i32
    %c0_i32_0 = arith.constant 0 : i32
    %c0_i32_1 = arith.constant 0 : i32
    return %c0_i32, %c0_i32_0 : i32, i32
  }
  func.func @transform_8(%arg0: i32) -> (i32, i32) {
    %c0_i32 = arith.constant 0 : i32
    %c0_i32_0 = arith.constant 0 : i32
    %c0_i32_1 = arith.constant 0 : i32
    return %c0_i32, %c0_i32_0 : i32, i32
  }
  func.func @transform_9(%arg0: i32) -> (i32, i32, i32) {
    %c0_i32 = arith.constant 0 : i32
    %c0_i32_0 = arith.constant 0 : i32
    %c0_i32_1 = arith.constant 0 : i32
    return %arg0, %c0_i32, %c0_i32_0 : i32, i32, i32
  }
}

</mosaic_0001>

<llo_original>
// kernel: feature_cnn_forward.1
$region0: #{feature_cnn_forward.1}
  #allocation0 [shape = 'u32[]', space=smem, size = 0x4, offset = 0x4, fixed_abs, tag = 'smem constant byte address 0x4 - core index']
  #allocation1 [shape = 'u32[72,128]{1,0:T(1,128)}', space=vmem, size = 0x9000, scoped, tag = 'internal scratch']
  #allocation2 [shape = 'f32[16,512]{1,0:T(8,128)}', space=vmem, size = 0x8000, scoped, tag = 'scratch operand']
  #allocation3 [shape = 'f32[144,256]{1,0:T(8,128)}', space=vmem, size = 0x24000, scoped, tag = 'scratch operand']
  #allocation4 [shape = 'f32[1,1]{1,0:T(1,128)S(1)}', space=vmem, size = 0x200, scoped, tag = 'scoped memory for feature_cnn_forward.1']
  %s0 = inlined_call_operand.vmem [shape: f32[2,4,256], index: 0, kind: input, shape index: {}]
  %s1 = inlined_call_operand.vmem [shape: f32[1,256], index: 1, kind: input, shape index: {}]
  %s2 = inlined_call_operand.vmem [shape: f32[1,256], index: 2, kind: input, shape index: {}]
  %s3 = inlined_call_operand.vmem [shape: f32[12,144], index: 3, kind: input, shape index: {}]
  %s4 = inlined_call_operand.vmem [shape: f32[12,1], index: 4, kind: input, shape index: {}]
  %s5 = inlined_call_operand.vmem [shape: f32[12,144], index: 5, kind: input, shape index: {}]
  %s6 = inlined_call_operand.vmem [shape: f32[12,1], index: 6, kind: input, shape index: {}]
  %s7 = inlined_call_operand.vmem [shape: f32[1,144], index: 7, kind: input, shape index: {}]
  %s8 = inlined_call_operand.<no memory space> [shape: f32[1,1], index: 8, kind: input, shape index: {}]
  %s9 = inlined_call_operand.vmem [shape: f32[2,1,256], index: 9, kind: output, shape index: {}]
  %s10 = sld [smem:[#allocation0]]
  $region69: #{feature_cnn_forward.1} parent=0
    _
  %s12 = ssub.s32 1, %s10
  %s13 = scalar_select 0, %s12, %s10
  %v14 = vstv %s8
  %15 = vst [vmem:[#allocation4] sm:$0x1] %v14
  loop: start=0, step=1, limit=4
  $region2: #{feature_cnn_forward.1} parent=0 // loop_pre_header
    _
  $region3: #{feature_cnn_forward.1} parent=0 // loop_header
    %s17 = sphi 0, %s21
    %p18 = scmp.ge.s32.totalorder %s17, 4
    %s27 = sphi 0, %s29
    %s30 = sphi 0, %s27
    %s31 = sphi 0, %s30
    %s47 = sphi 0, %s31
    %s51 = sphi 0, %s51
    %s53 = sphi 0, %s51
    %s54 = sphi 0, %s53
    %s68 = sphi 0, %s54
    %s72 = sphi 0, %s72
    %s74 = sphi 0, %s72
    %s75 = sphi 0, %s74
    %s89 = sphi 0, %s75
    %s93 = sphi 0, %s93
    %s95 = sphi 0, %s93
    %s96 = sphi 0, %s95
    %s110 = sphi 0, %s96
    %s114 = sphi 0, %s114
    %s116 = sphi 0, %s114
    %s117 = sphi 0, %s116
    %s131 = sphi 0, %s117
    %s135 = sphi 0, %s135
    %s137 = sphi 0, %s135
    %s138 = sphi 0, %s137
    %s152 = sphi 0, %s138
    %s156 = sphi 0, %s156
    %s158 = sphi 0, %s156
    %s159 = sphi 0, %s158
    %s173 = sphi 0, %s159
    %s177 = sphi 0, %s177
    %s179 = sphi 0, %s177
    %s180 = sphi 0, %s179
    %s194 = sphi 0, %s180
    %s198 = sphi 0, %s198
    %s200 = sphi 0, %s198
    %s201 = sphi 0, %s200
    %s215 = sphi 0, %s201
    %s221 = sphi 0, %s223
    %s224 = sphi 0, %s221
    %s225 = sphi 0, %s224
    %s241 = sphi 0, %s225
  $region4: #{feature_cnn_forward.1} parent=0 // loop_header_branch
    %20 = sbr.rel (%p18) target = $region8
  $region5: #{feature_cnn_forward.1} parent=0 // loop_body
    %s22 = ssub.s32 %s17, 1
    %s23 = ssub.s32 %s17, 2
    %s24 = sadd.s32 %s17, 1
    %s25 = ssub.s32 %s17, %s24
    %p26 = scmp.eq.s32.totalorder %s25, 0
    %s28 = sadd.s32 %s27, 1
    %s29 = scalar_select %p26, %s27, %s28
    %p32 = pneg %p26
    %p33 = scmp.eq.s32.totalorder %s17, 1
    %p34 = por %p32, %p33
    %p35 = scmp.ne.s32.totalorder %s27, %s30
    %p36 = scmp.eq.s32.totalorder %s17, 0
    %p37 = por %p35, %p36
    %p38 = scmp.ne.s32.totalorder %s27, %s30
    %p39 = scmp.eq.s32.totalorder %s22, 1
    %p40 = por %p38, %p39
    %p41 = scmp.ne.s32.totalorder %s30, %s31
    %p42 = scmp.eq.s32.totalorder %s22, 0
    %p43 = por %p41, %p42
    %p44 = scmp.ne.s32.totalorder %s30, %s31
    %p45 = scmp.eq.s32.totalorder %s23, 1
    %p46 = por %p44, %p45
    %p48 = scmp.ne.s32.totalorder %s31, %s47
    %p49 = scmp.eq.s32.totalorder %s23, 0
    %p50 = por %p48, %p49
    %s52 = sadd.s32 %s51, 1
    %p55 = scmp.eq.s32.totalorder %s17, 1
    %p56 = scmp.ne.s32.totalorder %s51, %s53
    %p57 = scmp.eq.s32.totalorder %s17, 0
    %p58 = por %p56, %p57
    %p59 = scmp.ne.s32.totalorder %s51, %s53
    %p60 = scmp.eq.s32.totalorder %s22, 1
    %p61 = por %p59, %p60
    %p62 = scmp.ne.s32.totalorder %s53, %s54
    %p63 = scmp.eq.s32.totalorder %s22, 0
    %p64 = por %p62, %p63
    %p65 = scmp.ne.s32.totalorder %s53, %s54
    %p66 = scmp.eq.s32.totalorder %s23, 1
    %p67 = por %p65, %p66
    %p69 = scmp.ne.s32.totalorder %s54, %s68
    %p70 = scmp.eq.s32.totalorder %s23, 0
    %p71 = por %p69, %p70
    %s73 = sadd.s32 %s72, 1
    %p76 = scmp.eq.s32.totalorder %s17, 1
    %p77 = scmp.ne.s32.totalorder %s72, %s74
    %p78 = scmp.eq.s32.totalorder %s17, 0
    %p79 = por %p77, %p78
    %p80 = scmp.ne.s32.totalorder %s72, %s74
    %p81 = scmp.eq.s32.totalorder %s22, 1
    %p82 = por %p80, %p81
    %p83 = scmp.ne.s32.totalorder %s74, %s75
    %p84 = scmp.eq.s32.totalorder %s22, 0
    %p85 = por %p83, %p84
    %p86 = scmp.ne.s32.totalorder %s74, %s75
    %p87 = scmp.eq.s32.totalorder %s23, 1
    %p88 = por %p86, %p87
    %p90 = scmp.ne.s32.totalorder %s75, %s89
    %p91 = scmp.eq.s32.totalorder %s23, 0
    %p92 = por %p90, %p91
    %s94 = sadd.s32 %s93, 1
    %p97 = scmp.eq.s32.totalorder %s17, 1
    %p98 = scmp.ne.s32.totalorder %s93, %s95
    %p99 = scmp.eq.s32.totalorder %s17, 0
    %p100 = por %p98, %p99
    %p101 = scmp.ne.s32.totalorder %s93, %s95
    %p102 = scmp.eq.s32.totalorder %s22, 1
    %p103 = por %p101, %p102
    %p104 = scmp.ne.s32.totalorder %s95, %s96
    %p105 = scmp.eq.s32.totalorder %s22, 0
    %p106 = por %p104, %p105
    %p107 = scmp.ne.s32.totalorder %s95, %s96
    %p108 = scmp.eq.s32.totalorder %s23, 1
    %p109 = por %p107, %p108
    %p111 = scmp.ne.s32.totalorder %s96, %s110
    %p112 = scmp.eq.s32.totalorder %s23, 0
    %p113 = por %p111, %p112
    %s115 = sadd.s32 %s114, 1
    %p118 = scmp.eq.s32.totalorder %s17, 1
    %p119 = scmp.ne.s32.totalorder %s114, %s116
    %p120 = scmp.eq.s32.totalorder %s17, 0
    %p121 = por %p119, %p120
    %p122 = scmp.ne.s32.totalorder %s114, %s116
    %p123 = scmp.eq.s32.totalorder %s22, 1
    %p124 = por %p122, %p123
    %p125 = scmp.ne.s32.totalorder %s116, %s117
    %p126 = scmp.eq.s32.totalorder %s22, 0
    %p127 = por %p125, %p126
    %p128 = scmp.ne.s32.totalorder %s116, %s117
    %p129 = scmp.eq.s32.totalorder %s23, 1
    %p130 = por %p128, %p129
    %p132 = scmp.ne.s32.totalorder %s117, %s131
    %p133 = scmp.eq.s32.totalorder %s23, 0
    %p134 = por %p132, %p133
    %s136 = sadd.s32 %s135, 1
    %p139 = scmp.eq.s32.totalorder %s17, 1
    %p140 = scmp.ne.s32.totalorder %s135, %s137
    %p141 = scmp.eq.s32.totalorder %s17, 0
    %p142 = por %p140, %p141
    %p143 = scmp.ne.s32.totalorder %s135, %s137
    %p144 = scmp.eq.s32.totalorder %s22, 1
    %p145 = por %p143, %p144
    %p146 = scmp.ne.s32.totalorder %s137, %s138
    %p147 = scmp.eq.s32.totalorder %s22, 0
    %p148 = por %p146, %p147
    %p149 = scmp.ne.s32.totalorder %s137, %s138
    %p150 = scmp.eq.s32.totalorder %s23, 1
    %p151 = por %p149, %p150
    %p153 = scmp.ne.s32.totalorder %s138, %s152
    %p154 = scmp.eq.s32.totalorder %s23, 0
    %p155 = por %p153, %p154
    %s157 = sadd.s32 %s156, 1
    %p160 = scmp.eq.s32.totalorder %s17, 1
    %p161 = scmp.ne.s32.totalorder %s156, %s158
    %p162 = scmp.eq.s32.totalorder %s17, 0
    %p163 = por %p161, %p162
    %p164 = scmp.ne.s32.totalorder %s156, %s158
    %p165 = scmp.eq.s32.totalorder %s22, 1
    %p166 = por %p164, %p165
    %p167 = scmp.ne.s32.totalorder %s158, %s159
    %p168 = scmp.eq.s32.totalorder %s22, 0
    %p169 = por %p167, %p168
    %p170 = scmp.ne.s32.totalorder %s158, %s159
    %p171 = scmp.eq.s32.totalorder %s23, 1
    %p172 = por %p170, %p171
    %p174 = scmp.ne.s32.totalorder %s159, %s173
    %p175 = scmp.eq.s32.totalorder %s23, 0
    %p176 = por %p174, %p175
    %s178 = sadd.s32 %s177, 1
    %p181 = scmp.eq.s32.totalorder %s17, 1
    %p182 = scmp.ne.s32.totalorder %s177, %s179
    %p183 = scmp.eq.s32.totalorder %s17, 0
    %p184 = por %p182, %p183
    %p185 = scmp.ne.s32.totalorder %s177, %s179
    %p186 = scmp.eq.s32.totalorder %s22, 1
    %p187 = por %p185, %p186
    %p188 = scmp.ne.s32.totalorder %s179, %s180
    %p189 = scmp.eq.s32.totalorder %s22, 0
    %p190 = por %p188, %p189
    %p191 = scmp.ne.s32.totalorder %s179, %s180
    %p192 = scmp.eq.s32.totalorder %s23, 1
    %p193 = por %p191, %p192
    %p195 = scmp.ne.s32.totalorder %s180, %s194
    %p196 = scmp.eq.s32.totalorder %s23, 0
    %p197 = por %p195, %p196
    %s199 = sadd.s32 %s198, 1
    %p202 = scmp.eq.s32.totalorder %s17, 1
    %p203 = scmp.ne.s32.totalorder %s198, %s200
    %p204 = scmp.eq.s32.totalorder %s17, 0
    %p205 = por %p203, %p204
    %p206 = scmp.ne.s32.totalorder %s198, %s200
    %p207 = scmp.eq.s32.totalorder %s22, 1
    %p208 = por %p206, %p207
    %p209 = scmp.ne.s32.totalorder %s200, %s201
    %p210 = scmp.eq.s32.totalorder %s22, 0
    %p211 = por %p209, %p210
    %p212 = scmp.ne.s32.totalorder %s200, %s201
    %p213 = scmp.eq.s32.totalorder %s23, 1
    %p214 = por %p212, %p213
    %p216 = scmp.ne.s32.totalorder %s201, %s215
    %p217 = scmp.eq.s32.totalorder %s23, 0
    %p218 = por %p216, %p217
    %s219 = ssub.s32 %s17, %s24
    %p220 = scmp.eq.s32.totalorder %s219, 0
    %s222 = sadd.s32 %s221, 1
    %s223 = scalar_select %p220, %s221, %s222
    %p226 = pneg %p220
    %p227 = scmp.eq.s32.totalorder %s17, 1
    %p228 = por %p226, %p227
    %p229 = scmp.ne.s32.totalorder %s221, %s224
    %p230 = scmp.eq.s32.totalorder %s17, 0
    %p231 = por %p229, %p230
    %p232 = scmp.ne.s32.totalorder %s221, %s224
    %p233 = scmp.eq.s32.totalorder %s22, 1
    %p234 = por %p232, %p233
    %p235 = scmp.ne.s32.totalorder %s224, %s225
    %p236 = scmp.eq.s32.totalorder %s22, 0
    %p237 = por %p235, %p236
    %p238 = scmp.ne.s32.totalorder %s224, %s225
    %p239 = scmp.eq.s32.totalorder %s23, 1
    %p240 = por %p238, %p239
    %p242 = scmp.ne.s32.totalorder %s225, %s241
    %p243 = scmp.eq.s32.totalorder %s23, 0
    %p244 = por %p242, %p243
    %p245 = scmp.le.s32.totalorder 1, %s17
    %p246 = scmp.lt.s32.totalorder %s17, 3
    %p247 = pnand %p245, %p246
    %p248 = pneg %p247
    // Predicated region
    $region9: #{feature_cnn_forward.1} parent=5 // pred_check
      _
    $region10: #{feature_cnn_forward.1} parent=5 // pred_check_branch
      %250 = sbr.rel (%p247) target = $region12
    $region11: #{feature_cnn_forward.1} parent=5 // pred_region
      %s251 = ssub.s32 %s17, 1
      // Predicated region
      $region13: #{feature_cnn_forward.1} parent=11 // pred_check
        %p252 = pneg %p64
      $region14: #{feature_cnn_forward.1} parent=11 // pred_check_branch
        %254 = sbr.rel (%p252) target = $region16
      $region15: #{feature_cnn_forward.1} parent=11 // pred_region
        _
      $region16: #{feature_cnn_forward.1} parent=11 // pred_fallthru
        _
      // Predicated region
      $region17: #{feature_cnn_forward.1} parent=11 // pred_check
        %p255 = pneg %p85
      $region18: #{feature_cnn_forward.1} parent=11 // pred_check_branch
        %257 = sbr.rel (%p255) target = $region20
      $region19: #{feature_cnn_forward.1} parent=11 // pred_region
        _
      $region20: #{feature_cnn_forward.1} parent=11 // pred_fallthru
        _
      // Predicated region
      $region21: #{feature_cnn_forward.1} parent=11 // pred_check
        %p258 = pneg %p106
      $region22: #{feature_cnn_forward.1} parent=11 // pred_check_branch
        %260 = sbr.rel (%p258) target = $region24
      $region23: #{feature_cnn_forward.1} parent=11 // pred_region
        _
      $region24: #{feature_cnn_forward.1} parent=11 // pred_fallthru
        _
      // Predicated region
      $region25: #{feature_cnn_forward.1} parent=11 // pred_check
        %p261 = pneg %p127
      $region26: #{feature_cnn_forward.1} parent=11 // pred_check_branch
        %263 = sbr.rel (%p261) target = $region28
      $region27: #{feature_cnn_forward.1} parent=11 // pred_region
        _
      $region28: #{feature_cnn_forward.1} parent=11 // pred_fallthru
        _
      // Predicated region
      $region29: #{feature_cnn_forward.1} parent=11 // pred_check
        %p264 = pneg %p148
      $region30: #{feature_cnn_forward.1} parent=11 // pred_check_branch
        %266 = sbr.rel (%p264) target = $region32
      $region31: #{feature_cnn_forward.1} parent=11 // pred_region
        _
      $region32: #{feature_cnn_forward.1} parent=11 // pred_fallthru
        _
      // Predicated region
      $region33: #{feature_cnn_forward.1} parent=11 // pred_check
        %p267 = pneg %p169
      $region34: #{feature_cnn_forward.1} parent=11 // pred_check_branch
        %269 = sbr.rel (%p267) target = $region36
      $region35: #{feature_cnn_forward.1} parent=11 // pred_region
        _
      $region36: #{feature_cnn_forward.1} parent=11 // pred_fallthru
        _
      // Predicated region
      $region37: #{feature_cnn_forward.1} parent=11 // pred_check
        %p270 = pneg %p190
      $region38: #{feature_cnn_forward.1} parent=11 // pred_check_branch
        %272 = sbr.rel (%p270) target = $region40
      $region39: #{feature_cnn_forward.1} parent=11 // pred_region
        _
      $region40: #{feature_cnn_forward.1} parent=11 // pred_fallthru
        _
      // Predicated region
      $region41: #{feature_cnn_forward.1} parent=11 // pred_check
        %p273 = pneg %p211
      $region42: #{feature_cnn_forward.1} parent=11 // pred_check_branch
        %275 = sbr.rel (%p273) target = $region44
      $region43: #{feature_cnn_forward.1} parent=11 // pred_region
        _
      $region44: #{feature_cnn_forward.1} parent=11 // pred_fallthru
        _
    $region12: #{feature_cnn_forward.1} parent=5 // pred_fallthru
      _
    %p276 = scmp.lt.s32.totalorder %s17, 2
    // Predicated region
    $region45: #{feature_cnn_forward.1} parent=5 // pred_check
      %p277 = pneg %p276
    $region46: #{feature_cnn_forward.1} parent=5 // pred_check_branch
      %279 = sbr.rel (%p277) target = $region48
    $region47: #{feature_cnn_forward.1} parent=5 // pred_region
      // Predicated region
      $region49: #{feature_cnn_forward.1} parent=47 // pred_check
        %p280 = pneg %p37
      $region50: #{feature_cnn_forward.1} parent=47 // pred_check_branch
        %282 = sbr.rel (%p280) target = $region52
      $region51: #{feature_cnn_forward.1} parent=47 // pred_region
        %p283 = scmp.lt.s32.totalorder %s17, 1
        %s284 = scalar_select %p283, %s17, 1
        %s285 = smul.addr %s284, 2
        %s286 = smul.addr %s285, 4
        %s287 = scalar_lea.vmem %s0, %s286
      $region52: #{feature_cnn_forward.1} parent=47 // pred_fallthru
        _
    $region48: #{feature_cnn_forward.1} parent=5 // pred_fallthru
      _
    %p288 = scmp.le.s32.totalorder 1, %s17
    %p289 = scmp.lt.s32.totalorder %s17, 3
    %p290 = pnand %p288, %p289
    %p291 = pneg %p290
    // Predicated region
    $region53: #{feature_cnn_forward.1} parent=5 // pred_check
      _
    $region54: #{feature_cnn_forward.1} parent=5 // pred_check_branch
      %293 = sbr.rel (%p290) target = $region56
    $region55: #{feature_cnn_forward.1} parent=5 // pred_region
      %s294 = ssub.s32 %s17, 1
      %p295 = scmp.lt.s32.totalorder %s22, 1
      %s296 = scalar_select %p295, %s22, 1
      %s297 = smul.addr %s296, 2
      %s298 = smul.addr %s297, 4
      %s299 = scalar_lea.vmem %s0, %s298
      %p300 = pneg %p43
      %p301 = pneg %p40
      %p302 = pneg %p64
      %p303 = pneg %p61
      %p304 = pneg %p85
      %p305 = pneg %p82
      %p306 = pneg %p106
      %p307 = pneg %p103
      %p308 = pneg %p127
      %p309 = pneg %p124
      %p310 = pneg %p148
      %p311 = pneg %p145
      %p312 = pneg %p169
      %p313 = pneg %p166
      %p314 = pneg %p190
      %p315 = pneg %p187
      %p316 = pneg %p211
      %p317 = pneg %p208
      %p318 = pneg %p237
      %p319 = pneg %p234
      %p320 = scmp.lt.s32.totalorder %s22, 1
      %s321 = scalar_select %p320, %s22, 1
      %s322 = smul.addr %s321, 2
      %s323 = scalar_lea.vmem %s9, %s322
      %p324 = scmp.lt.s32.totalorder %s22, 1
      %s325 = scalar_select %p324, %s22, 1
      %s326 = smul.addr %s325, 2
      %s327 = smul.addr %s326, 4
      %s328 = scalar_lea.vmem %s0, %s327
      %p329 = scmp.lt.s32.totalorder %s22, 1
      %s330 = scalar_select %p329, %s22, 1
      %s331 = smul.addr %s330, 2
      %s332 = scalar_lea.vmem %s9, %s331
      %333 = vst [vmem:[#allocation2] sm:$0xff] 0.0
      %334 = vst [vmem:[#allocation2 + $0x8] sm:$0xff] 0.0
      %335 = vst [vmem:[#allocation2 + $0x10] sm:$0xff] 0.0
      %336 = vst [vmem:[#allocation2 + $0x18] sm:$0xff] 0.0
      %337 = vst [vmem:[#allocation2 + $0x20] sm:$0xff] 0.0
      %338 = vst [vmem:[#allocation2 + $0x28] sm:$0xff] 0.0
      %339 = vst [vmem:[#allocation2 + $0x30] sm:$0xff] 0.0
      %340 = vst [vmem:[#allocation2 + $0x38] sm:$0xff] 0.0
      %v341 = vld [vmem:[%s328] sm:$0xff]
      %343 = vst [vmem:[#allocation1] ss:$2 sm:$0xff] %v341
      %v344 = vld.sshfl [vmem:[#allocation1] sm:$0xff pattern:$0x75316420]
      %v345 = vld.sshfl [vmem:[#allocation1 + $0x8] sm:$0xff pattern:$0x75316420]
      %348 = vst [vmem:[#allocation2 + $0x8] sm:$0xf] %v344
      %349 = vst [vmem:[#allocation2 + $0x10] sm:$0xf] %v345
      %v350 = vld [vmem:[%s1] sm:$0x3]
      %v351 = vld [vmem:[%s2] sm:$0x3]
      %v352 = vld [vmem:[#allocation2] sm:$0xff]
      %v353 = vld [vmem:[#allocation2 + $0x8] sm:$0xff]
      %v354 = vld [vmem:[#allocation2 + $0x10] sm:$0xff]
      %v355 = vld [vmem:[#allocation2 + $0x20] sm:$0xff]
      %v356 = vld [vmem:[#allocation2 + $0x28] sm:$0xff]
      %v357 = vld [vmem:[#allocation2 + $0x30] sm:$0xff]
      %v359 = vperm.slane %v350, 0
      %v360 = vperm.slane %v350, 1
      %361 = vrot.lane.b32.xlu0 %v359, 111
      %v362 = vpop.permute.xlu0 %361
      %363 = vrot.lane.b32.xlu0 %v360, 111
      %v364 = vpop.permute.xlu0 %363
      %vm365 = vcmask 908288
      %v366 = vsel %vm365, %v362, %v364
      %v370 = vmul.f32 %v352, %v362
      %v371 = vmul.f32 %v353, %v366
      %v372 = vmul.f32 %v354, %v364
      %v373 = vmul.f32 %v355, %v362
      %v374 = vmul.f32 %v356, %v366
      %v375 = vmul.f32 %v357, %v364
      %382 = vrot.lane.b32.xlu0 %v370, 17
      %v383 = vpop.permute.xlu0 %382
      %384 = vrot.lane.b32.xlu0 %v371, 17
      %v385 = vpop.permute.xlu0 %384
      %386 = vrot.lane.b32.xlu0 %v372, 17
      %v387 = vpop.permute.xlu0 %386
      %388 = vrot.lane.b32.xlu0 %v373, 17
      %v389 = vpop.permute.xlu0 %388
      %390 = vrot.lane.b32.xlu0 %v374, 17
      %v391 = vpop.permute.xlu0 %390
      %392 = vrot.lane.b32.xlu0 %v375, 17
      %v393 = vpop.permute.xlu0 %392
      %vm394 = vcmask 138240
      %v395 = vsel %vm394, %v383, %v385
      %v396 = vsel %vm394, %v385, %v387
      %v397 = vsel %vm394, %v389, %v391
      %v398 = vsel %vm394, %v391, %v393
      %403 = vst [vmem:[#allocation3] sm:$0xff] %v395
      %404 = vst [vmem:[#allocation3 + $0x8] sm:$0xff] %v396
      %405 = vst [vmem:[#allocation3 + $0x10] sm:$0xff] %v397
      %406 = vst [vmem:[#allocation3 + $0x18] sm:$0xff] %v398
      %v407 = vld [vmem:[#allocation2] sm:$0xff]
      %v408 = vld [vmem:[#allocation2 + $0x8] sm:$0xff]
      %v409 = vld [vmem:[#allocation2 + $0x10] sm:$0xff]
      %v410 = vld [vmem:[#allocation2 + $0x20] sm:$0xff]
      %v411 = vld [vmem:[#allocation2 + $0x28] sm:$0xff]
      %v412 = vld [vmem:[#allocation2 + $0x30] sm:$0xff]
      %419 = vrot.lane.b32.xlu0 %v407, 16
      %v420 = vpop.permute.xlu0 %419
      %421 = vrot.lane.b32.xlu0 %v408, 16
      %v422 = vpop.permute.xlu0 %421
      %423 = vrot.lane.b32.xlu0 %v409, 16
      %v424 = vpop.permute.xlu0 %423
      %425 = vrot.lane.b32.xlu0 %v410, 16
      %v426 = vpop.permute.xlu0 %425
      %427 = vrot.lane.b32.xlu0 %v411, 16
      %v428 = vpop.permute.xlu0 %427
      %429 = vrot.lane.b32.xlu0 %v412, 16
      %v430 = vpop.permute.xlu0 %429
      %vm431 = vcmask 130048
      %v432 = vsel %vm431, %v420, %v422
      %v433 = vsel %vm431, %v422, %v424
      %v434 = vsel %vm431, %v426, %v428
      %v435 = vsel %vm431, %v428, %v430
      %440 = vst [vmem:[#allocation3 + $0x20] sm:$0xff] %v432
      %441 = vst [vmem:[#allocation3 + $0x28] sm:$0xff] %v433
      %442 = vst [vmem:[#allocation3 + $0x30] sm:$0xff] %v434
      %443 = vst [vmem:[#allocation3 + $0x38] sm:$0xff] %v435
      %v444 = vld [vmem:[#allocation2] sm:$0xff]
      %v445 = vld [vmem:[#allocation2 + $0x8] sm:$0xff]
      %v446 = vld [vmem:[#allocation2 + $0x10] sm:$0xff]
      %v447 = vld [vmem:[#allocation2 + $0x20] sm:$0xff]
      %v448 = vld [vmem:[#allocation2 + $0x28] sm:$0xff]
      %v449 = vld [vmem:[#allocation2 + $0x30] sm:$0xff]
      %v451 = vperm.slane %v351, 0
      %v452 = vperm.slane %v351, 1
      %453 = vrot.lane.b32.xlu0 %v451, 113
      %v454 = vpop.permute.xlu0 %453
      %455 = vrot.lane.b32.xlu0 %v452, 113
      %v456 = vpop.permute.xlu0 %455
      %vm457 = vcmask 924672
      %v458 = vsel %vm457, %v454, %v456
      %v462 = vmul.f32 %v444, %v454
      %v463 = vmul.f32 %v445, %v458
      %v464 = vmul.f32 %v446, %v456
      %v465 = vmul.f32 %v447, %v454
      %v466 = vmul.f32 %v448, %v458
      %v467 = vmul.f32 %v449, %v456
      %474 = vrot.lane.b32.xlu0 %v462, 15
      %v475 = vpop.permute.xlu0 %474
      %476 = vrot.lane.b32.xlu0 %v463, 15
      %v477 = vpop.permute.xlu0 %476
      %478 = vrot.lane.b32.xlu0 %v464, 15
      %v479 = vpop.permute.xlu0 %478
      %480 = vrot.lane.b32.xlu0 %v465, 15
      %v481 = vpop.permute.xlu0 %480
      %482 = vrot.lane.b32.xlu0 %v466, 15
      %v483 = vpop.permute.xlu0 %482
      %484 = vrot.lane.b32.xlu0 %v467, 15
      %v485 = vpop.permute.xlu0 %484
      %vm486 = vcmask 121856
      %v487 = vsel %vm486, %v475, %v477
      %v488 = vsel %vm486, %v477, %v479
      %v489 = vsel %vm486, %v481, %v483
      %v490 = vsel %vm486, %v483, %v485
      %495 = vst [vmem:[#allocation3 + $0x40] sm:$0xff] %v487
      %496 = vst [vmem:[#allocation3 + $0x48] sm:$0xff] %v488
      %497 = vst [vmem:[#allocation3 + $0x50] sm:$0xff] %v489
      %498 = vst [vmem:[#allocation3 + $0x58] sm:$0xff] %v490
      %v499 = vld [vmem:[#allocation2] sm:$0xff]
      %v500 = vld [vmem:[#allocation2 + $0x8] sm:$0xff]
      %v501 = vld [vmem:[#allocation2 + $0x10] sm:$0xff]
      %v502 = vld [vmem:[#allocation2 + $0x20] sm:$0xff]
      %v503 = vld [vmem:[#allocation2 + $0x28] sm:$0xff]
      %v504 = vld [vmem:[#allocation2 + $0x30] sm:$0xff]
      %505 = vrot.lane.b32.xlu0 %v359, 127
      %v506 = vpop.permute.xlu0 %505
      %507 = vrot.lane.b32.xlu0 %v360, 127
      %v508 = vpop.permute.xlu0 %507
      %vm509 = vcmask 1039360
      %v510 = vsel %vm509, %v506, %v508
      %v514 = vmul.f32 %v499, %v506
      %v515 = vmul.f32 %v500, %v510
      %v516 = vmul.f32 %v501, %v508
      %v517 = vmul.f32 %v502, %v506
      %v518 = vmul.f32 %v503, %v510
      %v519 = vmul.f32 %v504, %v508
      %526 = vrot.lane.b32.xlu0 %v514, 1
      %v527 = vpop.permute.xlu0 %526
      %528 = vrot.lane.b32.xlu0 %v515, 1
      %v529 = vpop.permute.xlu0 %528
      %530 = vrot.lane.b32.xlu0 %v516, 1
      %v531 = vpop.permute.xlu0 %530
      %532 = vrot.lane.b32.xlu0 %v517, 1
      %v533 = vpop.permute.xlu0 %532
      %534 = vrot.lane.b32.xlu0 %v518, 1
      %v535 = vpop.permute.xlu0 %534
      %536 = vrot.lane.b32.xlu0 %v519, 1
      %v537 = vpop.permute.xlu0 %536
      %vm538 = vcmask 7168
      %v539 = vsel %vm538, %v527, %v529
      %v540 = vsel %vm538, %v529, %v531
      %v541 = vsel %vm538, %v533, %v535
      %v542 = vsel %vm538, %v535, %v537
      %547 = vst [vmem:[#allocation3 + $0x60] sm:$0xff] %v539
      %548 = vst [vmem:[#allocation3 + $0x68] sm:$0xff] %v540
      %549 = vst [vmem:[#allocation3 + $0x70] sm:$0xff] %v541
      %550 = vst [vmem:[#allocation3 + $0x78] sm:$0xff] %v542
      %v551 = vld [vmem:[#allocation2 + $0x8] sm:$0xff]
      %v552 = vld [vmem:[#allocation2 + $0x10] sm:$0xff]
      %v553 = vld [vmem:[#allocation2 + $0x28] sm:$0xff]
      %v554 = vld [vmem:[#allocation2 + $0x30] sm:$0xff]
      %555 = vst [vmem:[#allocation3 + $0x80] sm:$0xff] %v551
      %556 = vst [vmem:[#allocation3 + $0x88] sm:$0xff] %v552
      %557 = vst [vmem:[#allocation3 + $0x90] sm:$0xff] %v553
      %558 = vst [vmem:[#allocation3 + $0x98] sm:$0xff] %v554
      %v559 = vld [vmem:[#allocation2 + $0x8] sm:$0xff]
      %v560 = vld [vmem:[#allocation2 + $0x10] sm:$0xff]
      %v561 = vld [vmem:[#allocation2 + $0x18] sm:$0xff]
      %v562 = vld [vmem:[#allocation2 + $0x28] sm:$0xff]
      %v563 = vld [vmem:[#allocation2 + $0x30] sm:$0xff]
      %v564 = vld [vmem:[#allocation2 + $0x38] sm:$0xff]
      %565 = vrot.lane.b32.xlu0 %v451, 1
      %v566 = vpop.permute.xlu0 %565
      %567 = vrot.lane.b32.xlu0 %v452, 1
      %v568 = vpop.permute.xlu0 %567
      %v569 = vsel %vm538, %v566, %v568
      %v573 = vmul.f32 %v559, %v566
      %v574 = vmul.f32 %v560, %v569
      %v575 = vmul.f32 %v561, %v568
      %v576 = vmul.f32 %v562, %v566
      %v577 = vmul.f32 %v563, %v569
      %v578 = vmul.f32 %v564, %v568
      %585 = vrot.lane.b32.xlu0 %v573, 127
      %v586 = vpop.permute.xlu0 %585
      %587 = vrot.lane.b32.xlu0 %v574, 127
      %v588 = vpop.permute.xlu0 %587
      %589 = vrot.lane.b32.xlu0 %v575, 127
      %v590 = vpop.permute.xlu0 %589
      %591 = vrot.lane.b32.xlu0 %v576, 127
      %v592 = vpop.permute.xlu0 %591
      %593 = vrot.lane.b32.xlu0 %v577, 127
      %v594 = vpop.permute.xlu0 %593
      %595 = vrot.lane.b32.xlu0 %v578, 127
      %v596 = vpop.permute.xlu0 %595
      %v597 = vsel %vm509, %v586, %v588
      %v598 = vsel %vm509, %v588, %v590
      %v599 = vsel %vm509, %v592, %v594
      %v600 = vsel %vm509, %v594, %v596
      %605 = vst [vmem:[#allocation3 + $0xa0] sm:$0xff] %v597
      %606 = vst [vmem:[#allocation3 + $0xa8] sm:$0xff] %v598
      %607 = vst [vmem:[#allocation3 + $0xb0] sm:$0xff] %v599
      %608 = vst [vmem:[#allocation3 + $0xb8] sm:$0xff] %v600
      %v609 = vld [vmem:[#allocation2 + $0x8] sm:$0xff]
      %v610 = vld [vmem:[#allocation2 + $0x10] sm:$0xff]
      %v611 = vld [vmem:[#allocation2 + $0x18] sm:$0xff]
      %v612 = vld [vmem:[#allocation2 + $0x28] sm:$0xff]
      %v613 = vld [vmem:[#allocation2 + $0x30] sm:$0xff]
      %v614 = vld [vmem:[#allocation2 + $0x38] sm:$0xff]
      %615 = vrot.lane.b32.xlu0 %v359, 15
      %v616 = vpop.permute.xlu0 %615
      %617 = vrot.lane.b32.xlu0 %v360, 15
      %v618 = vpop.permute.xlu0 %617
      %v619 = vsel %vm486, %v616, %v618
      %v623 = vmul.f32 %v609, %v616
      %v624 = vmul.f32 %v610, %v619
      %v625 = vmul.f32 %v611, %v618
      %v626 = vmul.f32 %v612, %v616
      %v627 = vmul.f32 %v613, %v619
      %v628 = vmul.f32 %v614, %v618
      %635 = vrot.lane.b32.xlu0 %v623, 113
      %v636 = vpop.permute.xlu0 %635
      %637 = vrot.lane.b32.xlu0 %v624, 113
      %v638 = vpop.permute.xlu0 %637
      %639 = vrot.lane.b32.xlu0 %v625, 113
      %v640 = vpop.permute.xlu0 %639
      %641 = vrot.lane.b32.xlu0 %v626, 113
      %v642 = vpop.permute.xlu0 %641
      %643 = vrot.lane.b32.xlu0 %v627, 113
      %v644 = vpop.permute.xlu0 %643
      %645 = vrot.lane.b32.xlu0 %v628, 113
      %v646 = vpop.permute.xlu0 %645
      %v647 = vsel %vm457, %v636, %v638
      %v648 = vsel %vm457, %v638, %v640
      %v649 = vsel %vm457, %v642, %v644
      %v650 = vsel %vm457, %v644, %v646
      %655 = vst [vmem:[#allocation3 + $0xc0] sm:$0xff] %v647
      %656 = vst [vmem:[#allocation3 + $0xc8] sm:$0xff] %v648
      %657 = vst [vmem:[#allocation3 + $0xd0] sm:$0xff] %v649
      %658 = vst [vmem:[#allocation3 + $0xd8] sm:$0xff] %v650
      %v659 = vld [vmem:[#allocation2 + $0x8] sm:$0xff]
      %v660 = vld [vmem:[#allocation2 + $0x10] sm:$0xff]
      %v661 = vld [vmem:[#allocation2 + $0x18] sm:$0xff]
      %v662 = vld [vmem:[#allocation2 + $0x28] sm:$0xff]
      %v663 = vld [vmem:[#allocation2 + $0x30] sm:$0xff]
      %v664 = vld [vmem:[#allocation2 + $0x38] sm:$0xff]
      %671 = vrot.lane.b32.xlu0 %v659, 112
      %v672 = vpop.permute.xlu0 %671
      %673 = vrot.lane.b32.xlu0 %v660, 112
      %v674 = vpop.permute.xlu0 %673
      %675 = vrot.lane.b32.xlu0 %v661, 112
      %v676 = vpop.permute.xlu0 %675
      %677 = vrot.lane.b32.xlu0 %v662, 112
      %v678 = vpop.permute.xlu0 %677
      %679 = vrot.lane.b32.xlu0 %v663, 112
      %v680 = vpop.permute.xlu0 %679
      %681 = vrot.lane.b32.xlu0 %v664, 112
      %v682 = vpop.permute.xlu0 %681
      %vm683 = vcmask 916480
      %v684 = vsel %vm683, %v672, %v674
      %v685 = vsel %vm683, %v674, %v676
      %v686 = vsel %vm683, %v678, %v680
      %v687 = vsel %vm683, %v680, %v682
      %692 = vst [vmem:[#allocation3 + $0xe0] sm:$0xff] %v684
      %693 = vst [vmem:[#allocation3 + $0xe8] sm:$0xff] %v685
      %694 = vst [vmem:[#allocation3 + $0xf0] sm:$0xff] %v686
      %695 = vst [vmem:[#allocation3 + $0xf8] sm:$0xff] %v687
      %v696 = vld [vmem:[#allocation2 + $0x8] sm:$0xff]
      %v697 = vld [vmem:[#allocation2 + $0x10] sm:$0xff]
      %v698 = vld [vmem:[#allocation2 + $0x18] sm:$0xff]
      %v699 = vld [vmem:[#allocation2 + $0x28] sm:$0xff]
      %v700 = vld [vmem:[#allocation2 + $0x30] sm:$0xff]
      %v701 = vld [vmem:[#allocation2 + $0x38] sm:$0xff]
      %702 = vrot.lane.b32.xlu0 %v451, 17
      %v703 = vpop.permute.xlu0 %702
      %704 = vrot.lane.b32.xlu0 %v452, 17
      %v705 = vpop.permute.xlu0 %704
      %v706 = vsel %vm394, %v703, %v705
      %v710 = vmul.f32 %v696, %v703
      %v711 = vmul.f32 %v697, %v706
      %v712 = vmul.f32 %v698, %v705
      %v713 = vmul.f32 %v699, %v703
      %v714 = vmul.f32 %v700, %v706
      %v715 = vmul.f32 %v701, %v705
      %722 = vrot.lane.b32.xlu0 %v710, 111
      %v723 = vpop.permute.xlu0 %722
      %724 = vrot.lane.b32.xlu0 %v711, 111
      %v725 = vpop.permute.xlu0 %724
      %726 = vrot.lane.b32.xlu0 %v712, 111
      %v727 = vpop.permute.xlu0 %726
      %728 = vrot.lane.b32.xlu0 %v713, 111
      %v729 = vpop.permute.xlu0 %728
      %730 = vrot.lane.b32.xlu0 %v714, 111
      %v731 = vpop.permute.xlu0 %730
      %732 = vrot.lane.b32.xlu0 %v715, 111
      %v733 = vpop.permute.xlu0 %732
      %v734 = vsel %vm365, %v723, %v725
      %v735 = vsel %vm365, %v725, %v727
      %v736 = vsel %vm365, %v729, %v731
      %v737 = vsel %vm365, %v731, %v733
      %742 = vst [vmem:[#allocation3 + $0x100] sm:$0xff] %v734
      %743 = vst [vmem:[#allocation3 + $0x108] sm:$0xff] %v735
      %744 = vst [vmem:[#allocation3 + $0x110] sm:$0xff] %v736
      %745 = vst [vmem:[#allocation3 + $0x118] sm:$0xff] %v737
      %v746 = vld [vmem:[%s3] sm:$0xff]
      %v747 = vld [vmem:[%s3 + $0x8] sm:$0xff]
      %v748 = vld [vmem:[%s3 + $0x10] sm:$0xf]
      %v749 = vld [vmem:[%s3 + $0x18] sm:$0xf]
      %v750 = vld [vmem:[#allocation3] sm:$0xff]
      %v751 = vld [vmem:[#allocation3 + $0x8] sm:$0xff]
      %v752 = vld [vmem:[#allocation3 + $0x10] sm:$0xff]
      %v753 = vld [vmem:[#allocation3 + $0x18] sm:$0xff]
      %v754 = vld [vmem:[#allocation3 + $0x20] sm:$0xff]
      %v755 = vld [vmem:[#allocation3 + $0x28] sm:$0xff]
      %v756 = vld [vmem:[#allocation3 + $0x30] sm:$0xff]
      %v757 = vld [vmem:[#allocation3 + $0x38] sm:$0xff]
      %v758 = vld [vmem:[#allocation3 + $0x40] sm:$0xff]
      %v759 = vld [vmem:[#allocation3 + $0x48] sm:$0xff]
      %v760 = vld [vmem:[#allocation3 + $0x50] sm:$0xff]
      %v761 = vld [vmem:[#allocation3 + $0x58] sm:$0xff]
      %v762 = vld [vmem:[#allocation3 + $0x60] sm:$0xff]
      %v763 = vld [vmem:[#allocation3 + $0x68] sm:$0xff]
      %v764 = vld [vmem:[#allocation3 + $0x70] sm:$0xff]
      %v765 = vld [vmem:[#allocation3 + $0x78] sm:$0xff]
      %v766 = vld [vmem:[#allocation3 + $0x80] sm:$0xff]
      %v767 = vld [vmem:[#allocation3 + $0x88] sm:$0xff]
      %v768 = vld [vmem:[#allocation3 + $0x90] sm:$0xff]
      %v769 = vld [vmem:[#allocation3 + $0x98] sm:$0xff]
      %v770 = vld [vmem:[#allocation3 + $0xa0] sm:$0xff]
      %v771 = vld [vmem:[#allocation3 + $0xa8] sm:$0xff]
      %v772 = vld [vmem:[#allocation3 + $0xb0] sm:$0xff]
      %v773 = vld [vmem:[#allocation3 + $0xb8] sm:$0xff]
      %v774 = vld [vmem:[#allocation3 + $0xc0] sm:$0xff]
      %v775 = vld [vmem:[#allocation3 + $0xc8] sm:$0xff]
      %v776 = vld [vmem:[#allocation3 + $0xd0] sm:$0xff]
      %v777 = vld [vmem:[#allocation3 + $0xd8] sm:$0xff]
      %v778 = vld [vmem:[#allocation3 + $0xe0] sm:$0xff]
      %v779 = vld [vmem:[#allocation3 + $0xe8] sm:$0xff]
      %v780 = vld [vmem:[#allocation3 + $0xf0] sm:$0xff]
      %v781 = vld [vmem:[#allocation3 + $0xf8] sm:$0xff]
      %v782 = vld [vmem:[#allocation3 + $0x100] sm:$0xff]
      %v783 = vld [vmem:[#allocation3 + $0x108] sm:$0xff]
      %v784 = vld [vmem:[#allocation3 + $0x110] sm:$0xff]
      %v785 = vld [vmem:[#allocation3 + $0x118] sm:$0xff]
      %v786 = vld [vmem:[%s4] sm:$0xff]
      %v787 = vld [vmem:[%s4 + $0x8] sm:$0xf]
      %789 = vset.pattern.permute.xlu0 0
      %790 = vperm.xlu0 %789, %v786
      %v791 = vpop.permute.xlu0 %790
      %794 = vset.pattern.permute.xlu0 0
      %795 = vperm.xlu0 %794, %v787
      %v796 = vpop.permute.xlu0 %795
      %v799 = vsel %vm431, %v747, 0
      %v802 = vsel %vm431, %v749, 0
      %804 = vmatpush.msra.mxu0 %v780
      %805 = vmatpush.msra.mxu0 %v778
      %806 = vmatpush.msra.mxu0 %v776
      %807 = vmatpush.msra.mxu0 %v774
      %808 = vmatpush.msra.mxu0 %v772
      %809 = vmatpush.msra.mxu0 %v770
      %810 = vmatpush.msra.mxu0 %v768
      %811 = vmatpush.msra.mxu0 %v766
      %812 = vmatpush.msra.mxu0 %v764
      %813 = vmatpush.msra.mxu0 %v762
      %814 = vmatpush.msra.mxu0 %v760
      %815 = vmatpush.msra.mxu0 %v758
      %816 = vmatpush.msra.mxu0 %v756
      %817 = vmatpush.msra.mxu0 %v754
      %818 = vmatpush.msra.mxu0 %v752
      %819 = vmatpush.msra.mxu0 %v750
      %820 = vmatmul.f32.gmra.mxu0 %v746
      %v821 = vpop.f32.mrf.mxu0
      %v822 = vadd.f32 %v791, %v821
      %823 = vmatmul.f32.gmra.mxu0 %v748
      %v824 = vpop.f32.mrf.mxu0
      %v825 = vadd.f32 %v796, %v824
      %826 = vdwg.mxu0
      %827 = vmatpush.msra.mxu0 0.0
      %828 = vmatpush.msra.mxu0 0.0
      %829 = vmatpush.msra.mxu0 0.0
      %830 = vmatpush.msra.mxu0 0.0
      %831 = vmatpush.msra.mxu0 0.0
      %832 = vmatpush.msra.mxu0 0.0
      %833 = vmatpush.msra.mxu0 0.0
      %834 = vmatpush.msra.mxu0 0.0
      %835 = vmatpush.msra.mxu0 0.0
      %836 = vmatpush.msra.mxu0 0.0
      %837 = vmatpush.msra.mxu0 0.0
      %838 = vmatpush.msra.mxu0 0.0
      %839 = vmatpush.msra.mxu0 0.0
      %840 = vmatpush.msra.mxu0 0.0
      %841 = vmatpush.msra.mxu0 %v784
      %842 = vmatpush.msra.mxu0 %v782
      %843 = vmatmul.f32.gmra.mxu0 %v799
      %v844 = vpop.f32.mrf.mxu0
      %v845 = vadd.f32 %v822, %v844
      %846 = vmatmul.f32.gmra.mxu0 %v802
      %v847 = vpop.f32.mrf.mxu0
      %v848 = vadd.f32 %v825, %v847
      %849 = vdwg.mxu0
      %850 = vmatpush.msra.mxu0 %v781
      %851 = vmatpush.msra.mxu0 %v779
      %852 = vmatpush.msra.mxu0 %v777
      %853 = vmatpush.msra.mxu0 %v775
      %854 = vmatpush.msra.mxu0 %v773
      %855 = vmatpush.msra.mxu0 %v771
      %856 = vmatpush.msra.mxu0 %v769
      %857 = vmatpush.msra.mxu0 %v767
      %858 = vmatpush.msra.mxu0 %v765
      %859 = vmatpush.msra.mxu0 %v763
      %860 = vmatpush.msra.mxu0 %v761
      %861 = vmatpush.msra.mxu0 %v759
      %862 = vmatpush.msra.mxu0 %v757
      %863 = vmatpush.msra.mxu0 %v755
      %864 = vmatpush.msra.mxu0 %v753
      %865 = vmatpush.msra.mxu0 %v751
      %866 = vmatmul.f32.gmra.mxu0 %v746
      %v867 = vpop.f32.mrf.mxu0
      %v868 = vadd.f32 %v791, %v867
      %869 = vmatmul.f32.gmra.mxu0 %v748
      %v870 = vpop.f32.mrf.mxu0
      %v871 = vadd.f32 %v796, %v870
      %872 = vdwg.mxu0
      %873 = vmatpush.msra.mxu0 0.0
      %874 = vmatpush.msra.mxu0 0.0
      %875 = vmatpush.msra.mxu0 0.0
      %876 = vmatpush.msra.mxu0 0.0
      %877 = vmatpush.msra.mxu0 0.0
      %878 = vmatpush.msra.mxu0 0.0
      %879 = vmatpush.msra.mxu0 0.0
      %880 = vmatpush.msra.mxu0 0.0
      %881 = vmatpush.msra.mxu0 0.0
      %882 = vmatpush.msra.mxu0 0.0
      %883 = vmatpush.msra.mxu0 0.0
      %884 = vmatpush.msra.mxu0 0.0
      %885 = vmatpush.msra.mxu0 0.0
      %886 = vmatpush.msra.mxu0 0.0
      %887 = vmatpush.msra.mxu0 %v785
      %888 = vmatpush.msra.mxu0 %v783
      %889 = vmatmul.f32.gmra.mxu0 %v799
      %v890 = vpop.f32.mrf.mxu0
      %v891 = vadd.f32 %v868, %v890
      %892 = vmatmul.f32.gmra.mxu0 %v802
      %v893 = vpop.f32.mrf.mxu0
      %v894 = vadd.f32 %v871, %v893
      %895 = vdwg.mxu0
      %v896 = vmax.f32 %v845, 0.0
      %v897 = vmax.f32 %v891, 0.0
      %v898 = vmax.f32 %v848, 0.0
      %v899 = vmax.f32 %v894, 0.0
      %900 = vst [vmem:[#allocation2 + $0x8] sm:$0xff] %v896
      %901 = vst [vmem:[#allocation2 + $0x10] sm:$0xff] %v897
      %902 = vst [vmem:[#allocation2 + $0x28] sm:$0xf] %v898
      %903 = vst [vmem:[#allocation2 + $0x30] sm:$0xf] %v899
      %v904 = vld [vmem:[#allocation2] sm:$0xff]
      %v905 = vld [vmem:[#allocation2 + $0x8] sm:$0xff]
      %v906 = vld [vmem:[#allocation2 + $0x10] sm:$0xff]
      %v907 = vld [vmem:[#allocation2 + $0x20] sm:$0xff]
      %v908 = vld [vmem:[#allocation2 + $0x28] sm:$0xff]
      %v909 = vld [vmem:[#allocation2 + $0x30] sm:$0xff]
      %v910 = vmul.f32 %v904, %v362
      %v911 = vmul.f32 %v905, %v366
      %v912 = vmul.f32 %v906, %v364
      %v913 = vmul.f32 %v907, %v362
      %v914 = vmul.f32 %v908, %v366
      %v915 = vmul.f32 %v909, %v364
      %922 = vrot.lane.b32.xlu0 %v910, 17
      %v923 = vpop.permute.xlu0 %922
      %924 = vrot.lane.b32.xlu0 %v911, 17
      %v925 = vpop.permute.xlu0 %924
      %926 = vrot.lane.b32.xlu0 %v912, 17
      %v927 = vpop.permute.xlu0 %926
      %928 = vrot.lane.b32.xlu0 %v913, 17
      %v929 = vpop.permute.xlu0 %928
      %930 = vrot.lane.b32.xlu0 %v914, 17
      %v931 = vpop.permute.xlu0 %930
      %932 = vrot.lane.b32.xlu0 %v915, 17
      %v933 = vpop.permute.xlu0 %932
      %v934 = vsel %vm394, %v923, %v925
      %v935 = vsel %vm394, %v925, %v927
      %v936 = vsel %vm394, %v929, %v931
      %v937 = vsel %vm394, %v931, %v933
      %942 = vst [vmem:[#allocation3] sm:$0xff] %v934
      %943 = vst [vmem:[#allocation3 + $0x8] sm:$0xff] %v935
      %944 = vst [vmem:[#allocation3 + $0x10] sm:$0xff] %v936
      %945 = vst [vmem:[#allocation3 + $0x18] sm:$0xff] %v937
      %v946 = vld [vmem:[#allocation2] sm:$0xff]
      %v947 = vld [vmem:[#allocation2 + $0x8] sm:$0xff]
      %v948 = vld [vmem:[#allocation2 + $0x10] sm:$0xff]
      %v949 = vld [vmem:[#allocation2 + $0x20] sm:$0xff]
      %v950 = vld [vmem:[#allocation2 + $0x28] sm:$0xff]
      %v951 = vld [vmem:[#allocation2 + $0x30] sm:$0xff]
      %958 = vrot.lane.b32.xlu0 %v946, 16
      %v959 = vpop.permute.xlu0 %958
      %960 = vrot.lane.b32.xlu0 %v947, 16
      %v961 = vpop.permute.xlu0 %960
      %962 = vrot.lane.b32.xlu0 %v948, 16
      %v963 = vpop.permute.xlu0 %962
      %964 = vrot.lane.b32.xlu0 %v949, 16
      %v965 = vpop.permute.xlu0 %964
      %966 = vrot.lane.b32.xlu0 %v950, 16
      %v967 = vpop.permute.xlu0 %966
      %968 = vrot.lane.b32.xlu0 %v951, 16
      %v969 = vpop.permute.xlu0 %968
      %v970 = vsel %vm431, %v959, %v961
      %v971 = vsel %vm431, %v961, %v963
      %v972 = vsel %vm431, %v965, %v967
      %v973 = vsel %vm431, %v967, %v969
      %978 = vst [vmem:[#allocation3 + $0x20] sm:$0xff] %v970
      %979 = vst [vmem:[#allocation3 + $0x28] sm:$0xff] %v971
      %980 = vst [vmem:[#allocation3 + $0x30] sm:$0xff] %v972
      %981 = vst [vmem:[#allocation3 + $0x38] sm:$0xff] %v973
      %v982 = vld [vmem:[#allocation2] sm:$0xff]
      %v983 = vld [vmem:[#allocation2 + $0x8] sm:$0xff]
      %v984 = vld [vmem:[#allocation2 + $0x10] sm:$0xff]
      %v985 = vld [vmem:[#allocation2 + $0x20] sm:$0xff]
      %v986 = vld [vmem:[#allocation2 + $0x28] sm:$0xff]
      %v987 = vld [vmem:[#allocation2 + $0x30] sm:$0xff]
      %v988 = vmul.f32 %v982, %v454
      %v989 = vmul.f32 %v983, %v458
      %v990 = vmul.f32 %v984, %v456
      %v991 = vmul.f32 %v985, %v454
      %v992 = vmul.f32 %v986, %v458
      %v993 = vmul.f32 %v987, %v456
      %1000 = vrot.lane.b32.xlu0 %v988, 15
      %v1001 = vpop.permute.xlu0 %1000
      %1002 = vrot.lane.b32.xlu0 %v989, 15
      %v1003 = vpop.permute.xlu0 %1002
      %1004 = vrot.lane.b32.xlu0 %v990, 15
      %v1005 = vpop.permute.xlu0 %1004
      %1006 = vrot.lane.b32.xlu0 %v991, 15
      %v1007 = vpop.permute.xlu0 %1006
      %1008 = vrot.lane.b32.xlu0 %v992, 15
      %v1009 = vpop.permute.xlu0 %1008
      %1010 = vrot.lane.b32.xlu0 %v993, 15
      %v1011 = vpop.permute.xlu0 %1010
      %v1012 = vsel %vm486, %v1001, %v1003
      %v1013 = vsel %vm486, %v1003, %v1005
      %v1014 = vsel %vm486, %v1007, %v1009
      %v1015 = vsel %vm486, %v1009, %v1011
      %1020 = vst [vmem:[#allocation3 + $0x40] sm:$0xff] %v1012
      %1021 = vst [vmem:[#allocation3 + $0x48] sm:$0xff] %v1013
      %1022 = vst [vmem:[#allocation3 + $0x50] sm:$0xff] %v1014
      %1023 = vst [vmem:[#allocation3 + $0x58] sm:$0xff] %v1015
      %v1024 = vld [vmem:[#allocation2] sm:$0xff]
      %v1025 = vld [vmem:[#allocation2 + $0x8] sm:$0xff]
      %v1026 = vld [vmem:[#allocation2 + $0x10] sm:$0xff]
      %v1027 = vld [vmem:[#allocation2 + $0x20] sm:$0xff]
      %v1028 = vld [vmem:[#allocation2 + $0x28] sm:$0xff]
      %v1029 = vld [vmem:[#allocation2 + $0x30] sm:$0xff]
      %v1030 = vmul.f32 %v1024, %v506
      %v1031 = vmul.f32 %v1025, %v510
      %v1032 = vmul.f32 %v1026, %v508
      %v1033 = vmul.f32 %v1027, %v506
      %v1034 = vmul.f32 %v1028, %v510
      %v1035 = vmul.f32 %v1029, %v508
      %1042 = vrot.lane.b32.xlu0 %v1030, 1
      %v1043 = vpop.permute.xlu0 %1042
      %1044 = vrot.lane.b32.xlu0 %v1031, 1
      %v1045 = vpop.permute.xlu0 %1044
      %1046 = vrot.lane.b32.xlu0 %v1032, 1
      %v1047 = vpop.permute.xlu0 %1046
      %1048 = vrot.lane.b32.xlu0 %v1033, 1
      %v1049 = vpop.permute.xlu0 %1048
      %1050 = vrot.lane.b32.xlu0 %v1034, 1
      %v1051 = vpop.permute.xlu0 %1050
      %1052 = vrot.lane.b32.xlu0 %v1035, 1
      %v1053 = vpop.permute.xlu0 %1052
      %v1054 = vsel %vm538, %v1043, %v1045
      %v1055 = vsel %vm538, %v1045, %v1047
      %v1056 = vsel %vm538, %v1049, %v1051
      %v1057 = vsel %vm538, %v1051, %v1053
      %1062 = vst [vmem:[#allocation3 + $0x60] sm:$0xff] %v1054
      %1063 = vst [vmem:[#allocation3 + $0x68] sm:$0xff] %v1055
      %1064 = vst [vmem:[#allocation3 + $0x70] sm:$0xff] %v1056
      %1065 = vst [vmem:[#allocation3 + $0x78] sm:$0xff] %v1057
      %v1066 = vld [vmem:[#allocation2 + $0x8] sm:$0xff]
      %v1067 = vld [vmem:[#allocation2 + $0x10] sm:$0xff]
      %v1068 = vld [vmem:[#allocation2 + $0x28] sm:$0xff]
      %v1069 = vld [vmem:[#allocation2 + $0x30] sm:$0xff]
      %1070 = vst [vmem:[#allocation3 + $0x80] sm:$0xff] %v1066
      %1071 = vst [vmem:[#allocation3 + $0x88] sm:$0xff] %v1067
      %1072 = vst [vmem:[#allocation3 + $0x90] sm:$0xff] %v1068
      %1073 = vst [vmem:[#allocation3 + $0x98] sm:$0xff] %v1069
      %v1074 = vld [vmem:[#allocation2 + $0x8] sm:$0xff]
      %v1075 = vld [vmem:[#allocation2 + $0x10] sm:$0xff]
      %v1076 = vld [vmem:[#allocation2 + $0x18] sm:$0xff]
      %v1077 = vld [vmem:[#allocation2 + $0x28] sm:$0xff]
      %v1078 = vld [vmem:[#allocation2 + $0x30] sm:$0xff]
      %v1079 = vld [vmem:[#allocation2 + $0x38] sm:$0xff]
      %v1080 = vmul.f32 %v1074, %v566
      %v1081 = vmul.f32 %v1075, %v569
      %v1082 = vmul.f32 %v1076, %v568
      %v1083 = vmul.f32 %v1077, %v566
      %v1084 = vmul.f32 %v1078, %v569
      %v1085 = vmul.f32 %v1079, %v568
      %1092 = vrot.lane.b32.xlu0 %v1080, 127
      %v1093 = vpop.permute.xlu0 %1092
      %1094 = vrot.lane.b32.xlu0 %v1081, 127
      %v1095 = vpop.permute.xlu0 %1094
      %1096 = vrot.lane.b32.xlu0 %v1082, 127
      %v1097 = vpop.permute.xlu0 %1096
      %1098 = vrot.lane.b32.xlu0 %v1083, 127
      %v1099 = vpop.permute.xlu0 %1098
      %1100 = vrot.lane.b32.xlu0 %v1084, 127
      %v1101 = vpop.permute.xlu0 %1100
      %1102 = vrot.lane.b32.xlu0 %v1085, 127
      %v1103 = vpop.permute.xlu0 %1102
      %v1104 = vsel %vm509, %v1093, %v1095
      %v1105 = vsel %vm509, %v1095, %v1097
      %v1106 = vsel %vm509, %v1099, %v1101
      %v1107 = vsel %vm509, %v1101, %v1103
      %1112 = vst [vmem:[#allocation3 + $0xa0] sm:$0xff] %v1104
      %1113 = vst [vmem:[#allocation3 + $0xa8] sm:$0xff] %v1105
      %1114 = vst [vmem:[#allocation3 + $0xb0] sm:$0xff] %v1106
      %1115 = vst [vmem:[#allocation3 + $0xb8] sm:$0xff] %v1107
      %v1116 = vld [vmem:[#allocation2 + $0x8] sm:$0xff]
      %v1117 = vld [vmem:[#allocation2 + $0x10] sm:$0xff]
      %v1118 = vld [vmem:[#allocation2 + $0x18] sm:$0xff]
      %v1119 = vld [vmem:[#allocation2 + $0x28] sm:$0xff]
      %v1120 = vld [vmem:[#allocation2 + $0x30] sm:$0xff]
      %v1121 = vld [vmem:[#allocation2 + $0x38] sm:$0xff]
      %v1122 = vmul.f32 %v1116, %v616
      %v1123 = vmul.f32 %v1117, %v619
      %v1124 = vmul.f32 %v1118, %v618
      %v1125 = vmul.f32 %v1119, %v616
      %v1126 = vmul.f32 %v1120, %v619
      %v1127 = vmul.f32 %v1121, %v618
      %1134 = vrot.lane.b32.xlu0 %v1122, 113
      %v1135 = vpop.permute.xlu0 %1134
      %1136 = vrot.lane.b32.xlu0 %v1123, 113
      %v1137 = vpop.permute.xlu0 %1136
      %1138 = vrot.lane.b32.xlu0 %v1124, 113
      %v1139 = vpop.permute.xlu0 %1138
      %1140 = vrot.lane.b32.xlu0 %v1125, 113
      %v1141 = vpop.permute.xlu0 %1140
      %1142 = vrot.lane.b32.xlu0 %v1126, 113
      %v1143 = vpop.permute.xlu0 %1142
      %1144 = vrot.lane.b32.xlu0 %v1127, 113
      %v1145 = vpop.permute.xlu0 %1144
      %v1146 = vsel %vm457, %v1135, %v1137
      %v1147 = vsel %vm457, %v1137, %v1139
      %v1148 = vsel %vm457, %v1141, %v1143
      %v1149 = vsel %vm457, %v1143, %v1145
      %1154 = vst [vmem:[#allocation3 + $0xc0] sm:$0xff] %v1146
      %1155 = vst [vmem:[#allocation3 + $0xc8] sm:$0xff] %v1147
      %1156 = vst [vmem:[#allocation3 + $0xd0] sm:$0xff] %v1148
      %1157 = vst [vmem:[#allocation3 + $0xd8] sm:$0xff] %v1149
      %v1158 = vld [vmem:[#allocation2 + $0x8] sm:$0xff]
      %v1159 = vld [vmem:[#allocation2 + $0x10] sm:$0xff]
      %v1160 = vld [vmem:[#allocation2 + $0x18] sm:$0xff]
      %v1161 = vld [vmem:[#allocation2 + $0x28] sm:$0xff]
      %v1162 = vld [vmem:[#allocation2 + $0x30] sm:$0xff]
      %v1163 = vld [vmem:[#allocation2 + $0x38] sm:$0xff]
      %1170 = vrot.lane.b32.xlu0 %v1158, 112
      %v1171 = vpop.permute.xlu0 %1170
      %1172 = vrot.lane.b32.xlu0 %v1159, 112
      %v1173 = vpop.permute.xlu0 %1172
      %1174 = vrot.lane.b32.xlu0 %v1160, 112
      %v1175 = vpop.permute.xlu0 %1174
      %1176 = vrot.lane.b32.xlu0 %v1161, 112
      %v1177 = vpop.permute.xlu0 %1176
      %1178 = vrot.lane.b32.xlu0 %v1162, 112
      %v1179 = vpop.permute.xlu0 %1178
      %1180 = vrot.lane.b32.xlu0 %v1163, 112
      %v1181 = vpop.permute.xlu0 %1180
      %v1182 = vsel %vm683, %v1171, %v1173
      %v1183 = vsel %vm683, %v1173, %v1175
      %v1184 = vsel %vm683, %v1177, %v1179
      %v1185 = vsel %vm683, %v1179, %v1181
      %1190 = vst [vmem:[#allocation3 + $0xe0] sm:$0xff] %v1182
      %1191 = vst [vmem:[#allocation3 + $0xe8] sm:$0xff] %v1183
      %1192 = vst [vmem:[#allocation3 + $0xf0] sm:$0xff] %v1184
      %1193 = vst [vmem:[#allocation3 + $0xf8] sm:$0xff] %v1185
      %v1194 = vld [vmem:[#allocation2 + $0x8] sm:$0xff]
      %v1195 = vld [vmem:[#allocation2 + $0x10] sm:$0xff]
      %v1196 = vld [vmem:[#allocation2 + $0x18] sm:$0xff]
      %v1197 = vld [vmem:[#allocation2 + $0x28] sm:$0xff]
      %v1198 = vld [vmem:[#allocation2 + $0x30] sm:$0xff]
      %v1199 = vld [vmem:[#allocation2 + $0x38] sm:$0xff]
      %v1200 = vmul.f32 %v1194, %v703
      %v1201 = vmul.f32 %v1195, %v706
      %v1202 = vmul.f32 %v1196, %v705
      %v1203 = vmul.f32 %v1197, %v703
      %v1204 = vmul.f32 %v1198, %v706
      %v1205 = vmul.f32 %v1199, %v705
      %1212 = vrot.lane.b32.xlu0 %v1200, 111
      %v1213 = vpop.permute.xlu0 %1212
      %1214 = vrot.lane.b32.xlu0 %v1201, 111
      %v1215 = vpop.permute.xlu0 %1214
      %1216 = vrot.lane.b32.xlu0 %v1202, 111
      %v1217 = vpop.permute.xlu0 %1216
      %1218 = vrot.lane.b32.xlu0 %v1203, 111
      %v1219 = vpop.permute.xlu0 %1218
      %1220 = vrot.lane.b32.xlu0 %v1204, 111
      %v1221 = vpop.permute.xlu0 %1220
      %1222 = vrot.lane.b32.xlu0 %v1205, 111
      %v1223 = vpop.permute.xlu0 %1222
      %v1224 = vsel %vm365, %v1213, %v1215
      %v1225 = vsel %vm365, %v1215, %v1217
      %v1226 = vsel %vm365, %v1219, %v1221
      %v1227 = vsel %vm365, %v1221, %v1223
      %1232 = vst [vmem:[#allocation3 + $0x100] sm:$0xff] %v1224
      %1233 = vst [vmem:[#allocation3 + $0x108] sm:$0xff] %v1225
      %1234 = vst [vmem:[#allocation3 + $0x110] sm:$0xff] %v1226
      %1235 = vst [vmem:[#allocation3 + $0x118] sm:$0xff] %v1227
      %v1236 = vld [vmem:[%s5] sm:$0xff]
      %v1237 = vld [vmem:[%s5 + $0x8] sm:$0xff]
      %v1238 = vld [vmem:[%s5 + $0x10] sm:$0xf]
      %v1239 = vld [vmem:[%s5 + $0x18] sm:$0xf]
      %v1240 = vld [vmem:[#allocation3] sm:$0xff]
      %v1241 = vld [vmem:[#allocation3 + $0x8] sm:$0xff]
      %v1242 = vld [vmem:[#allocation3 + $0x10] sm:$0xff]
      %v1243 = vld [vmem:[#allocation3 + $0x18] sm:$0xff]
      %v1244 = vld [vmem:[#allocation3 + $0x20] sm:$0xff]
      %v1245 = vld [vmem:[#allocation3 + $0x28] sm:$0xff]
      %v1246 = vld [vmem:[#allocation3 + $0x30] sm:$0xff]
      %v1247 = vld [vmem:[#allocation3 + $0x38] sm:$0xff]
      %v1248 = vld [vmem:[#allocation3 + $0x40] sm:$0xff]
      %v1249 = vld [vmem:[#allocation3 + $0x48] sm:$0xff]
      %v1250 = vld [vmem:[#allocation3 + $0x50] sm:$0xff]
      %v1251 = vld [vmem:[#allocation3 + $0x58] sm:$0xff]
      %v1252 = vld [vmem:[#allocation3 + $0x60] sm:$0xff]
      %v1253 = vld [vmem:[#allocation3 + $0x68] sm:$0xff]
      %v1254 = vld [vmem:[#allocation3 + $0x70] sm:$0xff]
      %v1255 = vld [vmem:[#allocation3 + $0x78] sm:$0xff]
      %v1256 = vld [vmem:[#allocation3 + $0x80] sm:$0xff]
      %v1257 = vld [vmem:[#allocation3 + $0x88] sm:$0xff]
      %v1258 = vld [vmem:[#allocation3 + $0x90] sm:$0xff]
      %v1259 = vld [vmem:[#allocation3 + $0x98] sm:$0xff]
      %v1260 = vld [vmem:[#allocation3 + $0xa0] sm:$0xff]
      %v1261 = vld [vmem:[#allocation3 + $0xa8] sm:$0xff]
      %v1262 = vld [vmem:[#allocation3 + $0xb0] sm:$0xff]
      %v1263 = vld [vmem:[#allocation3 + $0xb8] sm:$0xff]
      %v1264 = vld [vmem:[#allocation3 + $0xc0] sm:$0xff]
      %v1265 = vld [vmem:[#allocation3 + $0xc8] sm:$0xff]
      %v1266 = vld [vmem:[#allocation3 + $0xd0] sm:$0xff]
      %v1267 = vld [vmem:[#allocation3 + $0xd8] sm:$0xff]
      %v1268 = vld [vmem:[#allocation3 + $0xe0] sm:$0xff]
      %v1269 = vld [vmem:[#allocation3 + $0xe8] sm:$0xff]
      %v1270 = vld [vmem:[#allocation3 + $0xf0] sm:$0xff]
      %v1271 = vld [vmem:[#allocation3 + $0xf8] sm:$0xff]
      %v1272 = vld [vmem:[#allocation3 + $0x100] sm:$0xff]
      %v1273 = vld [vmem:[#allocation3 + $0x108] sm:$0xff]
      %v1274 = vld [vmem:[#allocation3 + $0x110] sm:$0xff]
      %v1275 = vld [vmem:[#allocation3 + $0x118] sm:$0xff]
      %v1276 = vld [vmem:[%s6] sm:$0xff]
      %v1277 = vld [vmem:[%s6 + $0x8] sm:$0xf]
      %1279 = vset.pattern.permute.xlu0 0
      %1280 = vperm.xlu0 %1279, %v1276
      %v1281 = vpop.permute.xlu0 %1280
      %1284 = vset.pattern.permute.xlu0 0
      %1285 = vperm.xlu0 %1284, %v1277
      %v1286 = vpop.permute.xlu0 %1285
      %v1289 = vsel %vm431, %v1237, 0
      %v1292 = vsel %vm431, %v1239, 0
      %1294 = vmatpush.msra.mxu0 %v1270
      %1295 = vmatpush.msra.mxu0 %v1268
      %1296 = vmatpush.msra.mxu0 %v1266
      %1297 = vmatpush.msra.mxu0 %v1264
      %1298 = vmatpush.msra.mxu0 %v1262
      %1299 = vmatpush.msra.mxu0 %v1260
      %1300 = vmatpush.msra.mxu0 %v1258
      %1301 = vmatpush.msra.mxu0 %v1256
      %1302 = vmatpush.msra.mxu0 %v1254
      %1303 = vmatpush.msra.mxu0 %v1252
      %1304 = vmatpush.msra.mxu0 %v1250
      %1305 = vmatpush.msra.mxu0 %v1248
      %1306 = vmatpush.msra.mxu0 %v1246
      %1307 = vmatpush.msra.mxu0 %v1244
      %1308 = vmatpush.msra.mxu0 %v1242
      %1309 = vmatpush.msra.mxu0 %v1240
      %1310 = vmatmul.f32.gmra.mxu0 %v1236
      %v1311 = vpop.f32.mrf.mxu0
      %v1312 = vadd.f32 %v1281, %v1311
      %1313 = vmatmul.f32.gmra.mxu0 %v1238
      %v1314 = vpop.f32.mrf.mxu0
      %v1315 = vadd.f32 %v1286, %v1314
      %1316 = vdwg.mxu0
      %1317 = vmatpush.msra.mxu0 0.0
      %1318 = vmatpush.msra.mxu0 0.0
      %1319 = vmatpush.msra.mxu0 0.0
      %1320 = vmatpush.msra.mxu0 0.0
      %1321 = vmatpush.msra.mxu0 0.0
      %1322 = vmatpush.msra.mxu0 0.0
      %1323 = vmatpush.msra.mxu0 0.0
      %1324 = vmatpush.msra.mxu0 0.0
      %1325 = vmatpush.msra.mxu0 0.0
      %1326 = vmatpush.msra.mxu0 0.0
      %1327 = vmatpush.msra.mxu0 0.0
      %1328 = vmatpush.msra.mxu0 0.0
      %1329 = vmatpush.msra.mxu0 0.0
      %1330 = vmatpush.msra.mxu0 0.0
      %1331 = vmatpush.msra.mxu0 %v1274
      %1332 = vmatpush.msra.mxu0 %v1272
      %1333 = vmatmul.f32.gmra.mxu0 %v1289
      %v1334 = vpop.f32.mrf.mxu0
      %v1335 = vadd.f32 %v1312, %v1334
      %1336 = vmatmul.f32.gmra.mxu0 %v1292
      %v1337 = vpop.f32.mrf.mxu0
      %v1338 = vadd.f32 %v1315, %v1337
      %1339 = vdwg.mxu0
      %1340 = vmatpush.msra.mxu0 %v1271
      %1341 = vmatpush.msra.mxu0 %v1269
      %1342 = vmatpush.msra.mxu0 %v1267
      %1343 = vmatpush.msra.mxu0 %v1265
      %1344 = vmatpush.msra.mxu0 %v1263
      %1345 = vmatpush.msra.mxu0 %v1261
      %1346 = vmatpush.msra.mxu0 %v1259
      %1347 = vmatpush.msra.mxu0 %v1257
      %1348 = vmatpush.msra.mxu0 %v1255
      %1349 = vmatpush.msra.mxu0 %v1253
      %1350 = vmatpush.msra.mxu0 %v1251
      %1351 = vmatpush.msra.mxu0 %v1249
      %1352 = vmatpush.msra.mxu0 %v1247
      %1353 = vmatpush.msra.mxu0 %v1245
      %1354 = vmatpush.msra.mxu0 %v1243
      %1355 = vmatpush.msra.mxu0 %v1241
      %1356 = vmatmul.f32.gmra.mxu0 %v1236
      %v1357 = vpop.f32.mrf.mxu0
      %v1358 = vadd.f32 %v1281, %v1357
      %1359 = vmatmul.f32.gmra.mxu0 %v1238
      %v1360 = vpop.f32.mrf.mxu0
      %v1361 = vadd.f32 %v1286, %v1360
      %1362 = vdwg.mxu0
      %1363 = vmatpush.msra.mxu0 0.0
      %1364 = vmatpush.msra.mxu0 0.0
      %1365 = vmatpush.msra.mxu0 0.0
      %1366 = vmatpush.msra.mxu0 0.0
      %1367 = vmatpush.msra.mxu0 0.0
      %1368 = vmatpush.msra.mxu0 0.0
      %1369 = vmatpush.msra.mxu0 0.0
      %1370 = vmatpush.msra.mxu0 0.0
      %1371 = vmatpush.msra.mxu0 0.0
      %1372 = vmatpush.msra.mxu0 0.0
      %1373 = vmatpush.msra.mxu0 0.0
      %1374 = vmatpush.msra.mxu0 0.0
      %1375 = vmatpush.msra.mxu0 0.0
      %1376 = vmatpush.msra.mxu0 0.0
      %1377 = vmatpush.msra.mxu0 %v1275
      %1378 = vmatpush.msra.mxu0 %v1273
      %1379 = vmatmul.f32.gmra.mxu0 %v1289
      %v1380 = vpop.f32.mrf.mxu0
      %v1381 = vadd.f32 %v1358, %v1380
      %1382 = vmatmul.f32.gmra.mxu0 %v1292
      %v1383 = vpop.f32.mrf.mxu0
      %v1384 = vadd.f32 %v1361, %v1383
      %1385 = vdwg.mxu0
      %v1386 = vmax.f32 %v1335, 0.0
      %v1387 = vmax.f32 %v1381, 0.0
      %v1388 = vmax.f32 %v1338, 0.0
      %v1389 = vmax.f32 %v1384, 0.0
      %1390 = vst [vmem:[#allocation2 + $0x8] sm:$0xff] %v1386
      %1391 = vst [vmem:[#allocation2 + $0x10] sm:$0xff] %v1387
      %1392 = vst [vmem:[#allocation2 + $0x28] sm:$0xf] %v1388
      %1393 = vst [vmem:[#allocation2 + $0x30] sm:$0xf] %v1389
      %v1394 = vld [vmem:[#allocation2] sm:$0xff]
      %v1395 = vld [vmem:[#allocation2 + $0x8] sm:$0xff]
      %v1396 = vld [vmem:[#allocation2 + $0x10] sm:$0xff]
      %v1397 = vld [vmem:[#allocation2 + $0x20] sm:$0xff]
      %v1398 = vld [vmem:[#allocation2 + $0x28] sm:$0xff]
      %v1399 = vld [vmem:[#allocation2 + $0x30] sm:$0xff]
      %v1400 = vmul.f32 %v1394, %v362
      %v1401 = vmul.f32 %v1395, %v366
      %v1402 = vmul.f32 %v1396, %v364
      %v1403 = vmul.f32 %v1397, %v362
      %v1404 = vmul.f32 %v1398, %v366
      %v1405 = vmul.f32 %v1399, %v364
      %1412 = vrot.lane.b32.xlu0 %v1400, 17
      %v1413 = vpop.permute.xlu0 %1412
      %1414 = vrot.lane.b32.xlu0 %v1401, 17
      %v1415 = vpop.permute.xlu0 %1414
      %1416 = vrot.lane.b32.xlu0 %v1402, 17
      %v1417 = vpop.permute.xlu0 %1416
      %1418 = vrot.lane.b32.xlu0 %v1403, 17
      %v1419 = vpop.permute.xlu0 %1418
      %1420 = vrot.lane.b32.xlu0 %v1404, 17
      %v1421 = vpop.permute.xlu0 %1420
      %1422 = vrot.lane.b32.xlu0 %v1405, 17
      %v1423 = vpop.permute.xlu0 %1422
      %v1424 = vsel %vm394, %v1413, %v1415
      %v1425 = vsel %vm394, %v1415, %v1417
      %v1426 = vsel %vm394, %v1419, %v1421
      %v1427 = vsel %vm394, %v1421, %v1423
      %1432 = vst [vmem:[#allocation3] sm:$0xff] %v1424
      %1433 = vst [vmem:[#allocation3 + $0x8] sm:$0xff] %v1425
      %1434 = vst [vmem:[#allocation3 + $0x10] sm:$0xff] %v1426
      %1435 = vst [vmem:[#allocation3 + $0x18] sm:$0xff] %v1427
      %v1436 = vld [vmem:[#allocation2] sm:$0xff]
      %v1437 = vld [vmem:[#allocation2 + $0x8] sm:$0xff]
      %v1438 = vld [vmem:[#allocation2 + $0x10] sm:$0xff]
      %v1439 = vld [vmem:[#allocation2 + $0x20] sm:$0xff]
      %v1440 = vld [vmem:[#allocation2 + $0x28] sm:$0xff]
      %v1441 = vld [vmem:[#allocation2 + $0x30] sm:$0xff]
      %1448 = vrot.lane.b32.xlu0 %v1436, 16
      %v1449 = vpop.permute.xlu0 %1448
      %1450 = vrot.lane.b32.xlu0 %v1437, 16
      %v1451 = vpop.permute.xlu0 %1450
      %1452 = vrot.lane.b32.xlu0 %v1438, 16
      %v1453 = vpop.permute.xlu0 %1452
      %1454 = vrot.lane.b32.xlu0 %v1439, 16
      %v1455 = vpop.permute.xlu0 %1454
      %1456 = vrot.lane.b32.xlu0 %v1440, 16
      %v1457 = vpop.permute.xlu0 %1456
      %1458 = vrot.lane.b32.xlu0 %v1441, 16
      %v1459 = vpop.permute.xlu0 %1458
      %v1460 = vsel %vm431, %v1449, %v1451
      %v1461 = vsel %vm431, %v1451, %v1453
      %v1462 = vsel %vm431, %v1455, %v1457
      %v1463 = vsel %vm431, %v1457, %v1459
      %1468 = vst [vmem:[#allocation3 + $0x20] sm:$0xff] %v1460
      %1469 = vst [vmem:[#allocation3 + $0x28] sm:$0xff] %v1461
      %1470 = vst [vmem:[#allocation3 + $0x30] sm:$0xff] %v1462
      %1471 = vst [vmem:[#allocation3 + $0x38] sm:$0xff] %v1463
      %v1472 = vld [vmem:[#allocation2] sm:$0xff]
      %v1473 = vld [vmem:[#allocation2 + $0x8] sm:$0xff]
      %v1474 = vld [vmem:[#allocation2 + $0x10] sm:$0xff]
      %v1475 = vld [vmem:[#allocation2 + $0x20] sm:$0xff]
      %v1476 = vld [vmem:[#allocation2 + $0x28] sm:$0xff]
      %v1477 = vld [vmem:[#allocation2 + $0x30] sm:$0xff]
      %v1478 = vmul.f32 %v1472, %v454
      %v1479 = vmul.f32 %v1473, %v458
      %v1480 = vmul.f32 %v1474, %v456
      %v1481 = vmul.f32 %v1475, %v454
      %v1482 = vmul.f32 %v1476, %v458
      %v1483 = vmul.f32 %v1477, %v456
      %1490 = vrot.lane.b32.xlu0 %v1478, 15
      %v1491 = vpop.permute.xlu0 %1490
      %1492 = vrot.lane.b32.xlu0 %v1479, 15
      %v1493 = vpop.permute.xlu0 %1492
      %1494 = vrot.lane.b32.xlu0 %v1480, 15
      %v1495 = vpop.permute.xlu0 %1494
      %1496 = vrot.lane.b32.xlu0 %v1481, 15
      %v1497 = vpop.permute.xlu0 %1496
      %1498 = vrot.lane.b32.xlu0 %v1482, 15
      %v1499 = vpop.permute.xlu0 %1498
      %1500 = vrot.lane.b32.xlu0 %v1483, 15
      %v1501 = vpop.permute.xlu0 %1500
      %v1502 = vsel %vm486, %v1491, %v1493
      %v1503 = vsel %vm486, %v1493, %v1495
      %v1504 = vsel %vm486, %v1497, %v1499
      %v1505 = vsel %vm486, %v1499, %v1501
      %1510 = vst [vmem:[#allocation3 + $0x40] sm:$0xff] %v1502
      %1511 = vst [vmem:[#allocation3 + $0x48] sm:$0xff] %v1503
      %1512 = vst [vmem:[#allocation3 + $0x50] sm:$0xff] %v1504
      %1513 = vst [vmem:[#allocation3 + $0x58] sm:$0xff] %v1505
      %v1514 = vld [vmem:[#allocation2] sm:$0xff]
      %v1515 = vld [vmem:[#allocation2 + $0x8] sm:$0xff]
      %v1516 = vld [vmem:[#allocation2 + $0x10] sm:$0xff]
      %v1517 = vld [vmem:[#allocation2 + $0x20] sm:$0xff]
      %v1518 = vld [vmem:[#allocation2 + $0x28] sm:$0xff]
      %v1519 = vld [vmem:[#allocation2 + $0x30] sm:$0xff]
      %v1520 = vmul.f32 %v1514, %v506
      %v1521 = vmul.f32 %v1515, %v510
      %v1522 = vmul.f32 %v1516, %v508
      %v1523 = vmul.f32 %v1517, %v506
      %v1524 = vmul.f32 %v1518, %v510
      %v1525 = vmul.f32 %v1519, %v508
      %1532 = vrot.lane.b32.xlu0 %v1520, 1
      %v1533 = vpop.permute.xlu0 %1532
      %1534 = vrot.lane.b32.xlu0 %v1521, 1
      %v1535 = vpop.permute.xlu0 %1534
      %1536 = vrot.lane.b32.xlu0 %v1522, 1
      %v1537 = vpop.permute.xlu0 %1536
      %1538 = vrot.lane.b32.xlu0 %v1523, 1
      %v1539 = vpop.permute.xlu0 %1538
      %1540 = vrot.lane.b32.xlu0 %v1524, 1
      %v1541 = vpop.permute.xlu0 %1540
      %1542 = vrot.lane.b32.xlu0 %v1525, 1
      %v1543 = vpop.permute.xlu0 %1542
      %v1544 = vsel %vm538, %v1533, %v1535
      %v1545 = vsel %vm538, %v1535, %v1537
      %v1546 = vsel %vm538, %v1539, %v1541
      %v1547 = vsel %vm538, %v1541, %v1543
      %1552 = vst [vmem:[#allocation3 + $0x60] sm:$0xff] %v1544
      %1553 = vst [vmem:[#allocation3 + $0x68] sm:$0xff] %v1545
      %1554 = vst [vmem:[#allocation3 + $0x70] sm:$0xff] %v1546
      %1555 = vst [vmem:[#allocation3 + $0x78] sm:$0xff] %v1547
      %v1556 = vld [vmem:[#allocation2 + $0x8] sm:$0xff]
      %v1557 = vld [vmem:[#allocation2 + $0x10] sm:$0xff]
      %v1558 = vld [vmem:[#allocation2 + $0x28] sm:$0xff]
      %v1559 = vld [vmem:[#allocation2 + $0x30] sm:$0xff]
      %1560 = vst [vmem:[#allocation3 + $0x80] sm:$0xff] %v1556
      %1561 = vst [vmem:[#allocation3 + $0x88] sm:$0xff] %v1557
      %1562 = vst [vmem:[#allocation3 + $0x90] sm:$0xff] %v1558
      %1563 = vst [vmem:[#allocation3 + $0x98] sm:$0xff] %v1559
      %v1564 = vld [vmem:[#allocation2 + $0x8] sm:$0xff]
      %v1565 = vld [vmem:[#allocation2 + $0x10] sm:$0xff]
      %v1566 = vld [vmem:[#allocation2 + $0x18] sm:$0xff]
      %v1567 = vld [vmem:[#allocation2 + $0x28] sm:$0xff]
      %v1568 = vld [vmem:[#allocation2 + $0x30] sm:$0xff]
      %v1569 = vld [vmem:[#allocation2 + $0x38] sm:$0xff]
      %v1570 = vmul.f32 %v1564, %v566
      %v1571 = vmul.f32 %v1565, %v569
      %v1572 = vmul.f32 %v1566, %v568
      %v1573 = vmul.f32 %v1567, %v566
      %v1574 = vmul.f32 %v1568, %v569
      %v1575 = vmul.f32 %v1569, %v568
      %1582 = vrot.lane.b32.xlu0 %v1570, 127
      %v1583 = vpop.permute.xlu0 %1582
      %1584 = vrot.lane.b32.xlu0 %v1571, 127
      %v1585 = vpop.permute.xlu0 %1584
      %1586 = vrot.lane.b32.xlu0 %v1572, 127
      %v1587 = vpop.permute.xlu0 %1586
      %1588 = vrot.lane.b32.xlu0 %v1573, 127
      %v1589 = vpop.permute.xlu0 %1588
      %1590 = vrot.lane.b32.xlu0 %v1574, 127
      %v1591 = vpop.permute.xlu0 %1590
      %1592 = vrot.lane.b32.xlu0 %v1575, 127
      %v1593 = vpop.permute.xlu0 %1592
      %v1594 = vsel %vm509, %v1583, %v1585
      %v1595 = vsel %vm509, %v1585, %v1587
      %v1596 = vsel %vm509, %v1589, %v1591
      %v1597 = vsel %vm509, %v1591, %v1593
      %1602 = vst [vmem:[#allocation3 + $0xa0] sm:$0xff] %v1594
      %1603 = vst [vmem:[#allocation3 + $0xa8] sm:$0xff] %v1595
      %1604 = vst [vmem:[#allocation3 + $0xb0] sm:$0xff] %v1596
      %1605 = vst [vmem:[#allocation3 + $0xb8] sm:$0xff] %v1597
      %v1606 = vld [vmem:[#allocation2 + $0x8] sm:$0xff]
      %v1607 = vld [vmem:[#allocation2 + $0x10] sm:$0xff]
      %v1608 = vld [vmem:[#allocation2 + $0x18] sm:$0xff]
      %v1609 = vld [vmem:[#allocation2 + $0x28] sm:$0xff]
      %v1610 = vld [vmem:[#allocation2 + $0x30] sm:$0xff]
      %v1611 = vld [vmem:[#allocation2 + $0x38] sm:$0xff]
      %v1612 = vmul.f32 %v1606, %v616
      %v1613 = vmul.f32 %v1607, %v619
      %v1614 = vmul.f32 %v1608, %v618
      %v1615 = vmul.f32 %v1609, %v616
      %v1616 = vmul.f32 %v1610, %v619
      %v1617 = vmul.f32 %v1611, %v618
      %1624 = vrot.lane.b32.xlu0 %v1612, 113
      %v1625 = vpop.permute.xlu0 %1624
      %1626 = vrot.lane.b32.xlu0 %v1613, 113
      %v1627 = vpop.permute.xlu0 %1626
      %1628 = vrot.lane.b32.xlu0 %v1614, 113
      %v1629 = vpop.permute.xlu0 %1628
      %1630 = vrot.lane.b32.xlu0 %v1615, 113
      %v1631 = vpop.permute.xlu0 %1630
      %1632 = vrot.lane.b32.xlu0 %v1616, 113
      %v1633 = vpop.permute.xlu0 %1632
      %1634 = vrot.lane.b32.xlu0 %v1617, 113
      %v1635 = vpop.permute.xlu0 %1634
      %v1636 = vsel %vm457, %v1625, %v1627
      %v1637 = vsel %vm457, %v1627, %v1629
      %v1638 = vsel %vm457, %v1631, %v1633
      %v1639 = vsel %vm457, %v1633, %v1635
      %1644 = vst [vmem:[#allocation3 + $0xc0] sm:$0xff] %v1636
      %1645 = vst [vmem:[#allocation3 + $0xc8] sm:$0xff] %v1637
      %1646 = vst [vmem:[#allocation3 + $0xd0] sm:$0xff] %v1638
      %1647 = vst [vmem:[#allocation3 + $0xd8] sm:$0xff] %v1639
      %v1648 = vld [vmem:[#allocation2 + $0x8] sm:$0xff]
      %v1649 = vld [vmem:[#allocation2 + $0x10] sm:$0xff]
      %v1650 = vld [vmem:[#allocation2 + $0x18] sm:$0xff]
      %v1651 = vld [vmem:[#allocation2 + $0x28] sm:$0xff]
      %v1652 = vld [vmem:[#allocation2 + $0x30] sm:$0xff]
      %v1653 = vld [vmem:[#allocation2 + $0x38] sm:$0xff]
      %1660 = vrot.lane.b32.xlu0 %v1648, 112
      %v1661 = vpop.permute.xlu0 %1660
      %1662 = vrot.lane.b32.xlu0 %v1649, 112
      %v1663 = vpop.permute.xlu0 %1662
      %1664 = vrot.lane.b32.xlu0 %v1650, 112
      %v1665 = vpop.permute.xlu0 %1664
      %1666 = vrot.lane.b32.xlu0 %v1651, 112
      %v1667 = vpop.permute.xlu0 %1666
      %1668 = vrot.lane.b32.xlu0 %v1652, 112
      %v1669 = vpop.permute.xlu0 %1668
      %1670 = vrot.lane.b32.xlu0 %v1653, 112
      %v1671 = vpop.permute.xlu0 %1670
      %v1672 = vsel %vm683, %v1661, %v1663
      %v1673 = vsel %vm683, %v1663, %v1665
      %v1674 = vsel %vm683, %v1667, %v1669
      %v1675 = vsel %vm683, %v1669, %v1671
      %1680 = vst [vmem:[#allocation3 + $0xe0] sm:$0xff] %v1672
      %1681 = vst [vmem:[#allocation3 + $0xe8] sm:$0xff] %v1673
      %1682 = vst [vmem:[#allocation3 + $0xf0] sm:$0xff] %v1674
      %1683 = vst [vmem:[#allocation3 + $0xf8] sm:$0xff] %v1675
      %v1684 = vld [vmem:[#allocation2 + $0x8] sm:$0xff]
      %v1685 = vld [vmem:[#allocation2 + $0x10] sm:$0xff]
      %v1686 = vld [vmem:[#allocation2 + $0x18] sm:$0xff]
      %v1687 = vld [vmem:[#allocation2 + $0x28] sm:$0xff]
      %v1688 = vld [vmem:[#allocation2 + $0x30] sm:$0xff]
      %v1689 = vld [vmem:[#allocation2 + $0x38] sm:$0xff]
      %v1690 = vmul.f32 %v1684, %v703
      %v1691 = vmul.f32 %v1685, %v706
      %v1692 = vmul.f32 %v1686, %v705
      %v1693 = vmul.f32 %v1687, %v703
      %v1694 = vmul.f32 %v1688, %v706
      %v1695 = vmul.f32 %v1689, %v705
      %1702 = vrot.lane.b32.xlu0 %v1690, 111
      %v1703 = vpop.permute.xlu0 %1702
      %1704 = vrot.lane.b32.xlu0 %v1691, 111
      %v1705 = vpop.permute.xlu0 %1704
      %1706 = vrot.lane.b32.xlu0 %v1692, 111
      %v1707 = vpop.permute.xlu0 %1706
      %1708 = vrot.lane.b32.xlu0 %v1693, 111
      %v1709 = vpop.permute.xlu0 %1708
      %1710 = vrot.lane.b32.xlu0 %v1694, 111
      %v1711 = vpop.permute.xlu0 %1710
      %1712 = vrot.lane.b32.xlu0 %v1695, 111
      %v1713 = vpop.permute.xlu0 %1712
      %v1714 = vsel %vm365, %v1703, %v1705
      %v1715 = vsel %vm365, %v1705, %v1707
      %v1716 = vsel %vm365, %v1709, %v1711
      %v1717 = vsel %vm365, %v1711, %v1713
      %1722 = vst [vmem:[#allocation3 + $0x100] sm:$0xff] %v1714
      %1723 = vst [vmem:[#allocation3 + $0x108] sm:$0xff] %v1715
      %1724 = vst [vmem:[#allocation3 + $0x110] sm:$0xff] %v1716
      %1725 = vst [vmem:[#allocation3 + $0x118] sm:$0xff] %v1717
      %v1726 = vld [vmem:[%s7] sm:$0x3]
      %v1727 = vld [vmem:[#allocation3] sm:$0xff]
      %v1728 = vld [vmem:[#allocation3 + $0x8] sm:$0xff]
      %v1729 = vld [vmem:[#allocation3 + $0x10] sm:$0xff]
      %v1730 = vld [vmem:[#allocation3 + $0x18] sm:$0xff]
      %v1731 = vld [vmem:[#allocation3 + $0x20] sm:$0xff]
      %v1732 = vld [vmem:[#allocation3 + $0x28] sm:$0xff]
      %v1733 = vld [vmem:[#allocation3 + $0x30] sm:$0xff]
      %v1734 = vld [vmem:[#allocation3 + $0x38] sm:$0xff]
      %v1735 = vld [vmem:[#allocation3 + $0x40] sm:$0xff]
      %v1736 = vld [vmem:[#allocation3 + $0x48] sm:$0xff]
      %v1737 = vld [vmem:[#allocation3 + $0x50] sm:$0xff]
      %v1738 = vld [vmem:[#allocation3 + $0x58] sm:$0xff]
      %v1739 = vld [vmem:[#allocation3 + $0x60] sm:$0xff]
      %v1740 = vld [vmem:[#allocation3 + $0x68] sm:$0xff]
      %v1741 = vld [vmem:[#allocation3 + $0x70] sm:$0xff]
      %v1742 = vld [vmem:[#allocation3 + $0x78] sm:$0xff]
      %v1743 = vld [vmem:[#allocation3 + $0x80] sm:$0xff]
      %v1744 = vld [vmem:[#allocation3 + $0x88] sm:$0xff]
      %v1745 = vld [vmem:[#allocation3 + $0x90] sm:$0xff]
      %v1746 = vld [vmem:[#allocation3 + $0x98] sm:$0xff]
      %v1747 = vld [vmem:[#allocation3 + $0xa0] sm:$0xff]
      %v1748 = vld [vmem:[#allocation3 + $0xa8] sm:$0xff]
      %v1749 = vld [vmem:[#allocation3 + $0xb0] sm:$0xff]
      %v1750 = vld [vmem:[#allocation3 + $0xb8] sm:$0xff]
      %v1751 = vld [vmem:[#allocation3 + $0xc0] sm:$0xff]
      %v1752 = vld [vmem:[#allocation3 + $0xc8] sm:$0xff]
      %v1753 = vld [vmem:[#allocation3 + $0xd0] sm:$0xff]
      %v1754 = vld [vmem:[#allocation3 + $0xd8] sm:$0xff]
      %v1755 = vld [vmem:[#allocation3 + $0xe0] sm:$0xff]
      %v1756 = vld [vmem:[#allocation3 + $0xe8] sm:$0xff]
      %v1757 = vld [vmem:[#allocation3 + $0xf0] sm:$0xff]
      %v1758 = vld [vmem:[#allocation3 + $0xf8] sm:$0xff]
      %v1759 = vld [vmem:[#allocation3 + $0x100] sm:$0xff]
      %v1760 = vld [vmem:[#allocation3 + $0x108] sm:$0xff]
      %v1761 = vld [vmem:[#allocation3 + $0x110] sm:$0xff]
      %v1762 = vld [vmem:[#allocation3 + $0x118] sm:$0xff]
      %v1763 = vld [vmem:[#allocation4] sm:$0x1]
      %1765 = vset.pattern.permute.xlu0 0
      %1766 = vperm.xlu0 %1765, %v1763
      %v1767 = vpop.permute.xlu0 %1766
      %v1769 = vperm.slane %v1767, 0
      %v1771 = vperm.slane %v1726, 0
      %v1772 = vperm.slane %v1726, 1
      %v1774 = vsel %vm431, %v1772, 0
      %1776 = vmatpush.msra.mxu0 %v1757
      %1777 = vmatpush.msra.mxu0 %v1755
      %1778 = vmatpush.msra.mxu0 %v1753
      %1779 = vmatpush.msra.mxu0 %v1751
      %1780 = vmatpush.msra.mxu0 %v1749
      %1781 = vmatpush.msra.mxu0 %v1747
      %1782 = vmatpush.msra.mxu0 %v1745
      %1783 = vmatpush.msra.mxu0 %v1743
      %1784 = vmatpush.msra.mxu0 %v1741
      %1785 = vmatpush.msra.mxu0 %v1739
      %1786 = vmatpush.msra.mxu0 %v1737
      %1787 = vmatpush.msra.mxu0 %v1735
      %1788 = vmatpush.msra.mxu0 %v1733
      %1789 = vmatpush.msra.mxu0 %v1731
      %1790 = vmatpush.msra.mxu0 %v1729
      %1791 = vmatpush.msra.mxu0 %v1727
      %1792 = vmatmul.f32.gmra.mxu0 %v1771
      %v1793 = vpop.f32.mrf.mxu0
      %v1794 = vadd.f32 %v1769, %v1793
      %1795 = vdwg.mxu0
      %1796 = vmatpush.msra.mxu0 0.0
      %1797 = vmatpush.msra.mxu0 0.0
      %1798 = vmatpush.msra.mxu0 0.0
      %1799 = vmatpush.msra.mxu0 0.0
      %1800 = vmatpush.msra.mxu0 0.0
      %1801 = vmatpush.msra.mxu0 0.0
      %1802 = vmatpush.msra.mxu0 0.0
      %1803 = vmatpush.msra.mxu0 0.0
      %1804 = vmatpush.msra.mxu0 0.0
      %1805 = vmatpush.msra.mxu0 0.0
      %1806 = vmatpush.msra.mxu0 0.0
      %1807 = vmatpush.msra.mxu0 0.0
      %1808 = vmatpush.msra.mxu0 0.0
      %1809 = vmatpush.msra.mxu0 0.0
      %1810 = vmatpush.msra.mxu0 %v1761
      %1811 = vmatpush.msra.mxu0 %v1759
      %1812 = vmatmul.f32.gmra.mxu0 %v1774
      %v1813 = vpop.f32.mrf.mxu0
      %v1814 = vadd.f32 %v1794, %v1813
      %1815 = vdwg.mxu0
      %1816 = vmatpush.msra.mxu0 %v1758
      %1817 = vmatpush.msra.mxu0 %v1756
      %1818 = vmatpush.msra.mxu0 %v1754
      %1819 = vmatpush.msra.mxu0 %v1752
      %1820 = vmatpush.msra.mxu0 %v1750
      %1821 = vmatpush.msra.mxu0 %v1748
      %1822 = vmatpush.msra.mxu0 %v1746
      %1823 = vmatpush.msra.mxu0 %v1744
      %1824 = vmatpush.msra.mxu0 %v1742
      %1825 = vmatpush.msra.mxu0 %v1740
      %1826 = vmatpush.msra.mxu0 %v1738
      %1827 = vmatpush.msra.mxu0 %v1736
      %1828 = vmatpush.msra.mxu0 %v1734
      %1829 = vmatpush.msra.mxu0 %v1732
      %1830 = vmatpush.msra.mxu0 %v1730
      %1831 = vmatpush.msra.mxu0 %v1728
      %1832 = vmatmul.f32.gmra.mxu0 %v1771
      %v1833 = vpop.f32.mrf.mxu0
      %v1834 = vadd.f32 %v1769, %v1833
      %1835 = vdwg.mxu0
      %1836 = vmatpush.msra.mxu0 0.0
      %1837 = vmatpush.msra.mxu0 0.0
      %1838 = vmatpush.msra.mxu0 0.0
      %1839 = vmatpush.msra.mxu0 0.0
      %1840 = vmatpush.msra.mxu0 0.0
      %1841 = vmatpush.msra.mxu0 0.0
      %1842 = vmatpush.msra.mxu0 0.0
      %1843 = vmatpush.msra.mxu0 0.0
      %1844 = vmatpush.msra.mxu0 0.0
      %1845 = vmatpush.msra.mxu0 0.0
      %1846 = vmatpush.msra.mxu0 0.0
      %1847 = vmatpush.msra.mxu0 0.0
      %1848 = vmatpush.msra.mxu0 0.0
      %1849 = vmatpush.msra.mxu0 0.0
      %1850 = vmatpush.msra.mxu0 %v1762
      %1851 = vmatpush.msra.mxu0 %v1760
      %1852 = vmatmul.f32.gmra.mxu0 %v1774
      %v1853 = vpop.f32.mrf.mxu0
      %v1854 = vadd.f32 %v1834, %v1853
      %1855 = vdwg.mxu0
      %v1858 = vrot.slane %v1854, 7
      %vm1859 = vcmask 1040384
      %v1860 = vsel %vm1859, %v1814, %v1858
      %v1862 = vlaneseq
      %vm1863 = vcmp.ge.s32.totalorder %v1862, 0
      %vm1864 = vcmp.lt.s32.totalorder %v1862, 256
      %vm1865 = vmand %vm1863, %vm1864
      %1866 = vst.msk [vmem:[%s332] sm:$0x3] %vm1865, %v1860
      %p1867 = scmp.lt.s32.totalorder %s22, 1
      %s1868 = scalar_select %p1867, %s22, 1
      %s1869 = smul.addr %s1868, 2
      %s1870 = scalar_lea.vmem %s9, %s1869
      // Predicated region
      $region57: #{feature_cnn_forward.1} parent=55 // pred_check
        %p1871 = pneg %p234
      $region58: #{feature_cnn_forward.1} parent=55 // pred_check_branch
        %1873 = sbr.rel (%p1871) target = $region60
      $region59: #{feature_cnn_forward.1} parent=55 // pred_region
        _
      $region60: #{feature_cnn_forward.1} parent=55 // pred_fallthru
        _
    $region56: #{feature_cnn_forward.1} parent=5 // pred_fallthru
      _
    %p1874 = scmp.le.s32.totalorder 2, %s17
    // Predicated region
    $region61: #{feature_cnn_forward.1} parent=5 // pred_check
      %p1875 = pneg %p1874
    $region62: #{feature_cnn_forward.1} parent=5 // pred_check_branch
      %1877 = sbr.rel (%p1875) target = $region64
    $region63: #{feature_cnn_forward.1} parent=5 // pred_region
      %s1878 = ssub.s32 %s17, 2
      // Predicated region
      $region65: #{feature_cnn_forward.1} parent=63 // pred_check
        %p1879 = pneg %p240
      $region66: #{feature_cnn_forward.1} parent=63 // pred_check_branch
        %1881 = sbr.rel (%p1879) target = $region68
      $region67: #{feature_cnn_forward.1} parent=63 // pred_region
        %p1882 = scmp.lt.s32.totalorder %s23, 1
        %s1883 = scalar_select %p1882, %s23, 1
        %s1884 = smul.addr %s1883, 2
        %s1885 = scalar_lea.vmem %s9, %s1884
      $region68: #{feature_cnn_forward.1} parent=63 // pred_fallthru
        _
    $region64: #{feature_cnn_forward.1} parent=5 // pred_fallthru
      _
  $region6: #{feature_cnn_forward.1} parent=0 // loop_footer
    %s21 = sadd.s32 1, %s17
  $region7: #{feature_cnn_forward.1} parent=0 // loop_footer_branch
    %16 = sbr.rel target = $region3
  $region8: #{feature_cnn_forward.1} parent=0 // loop_exit
    _

</llo_original>
